<compile_context>
chip_gen: v7x
topology: tpu7x:2x2x1
jax: 0.10.0
libtpu: 0.0.40
codegen_flags: <defaults>
</compile_context>

<pallas_src>
import functools

import jax
import jax.numpy as jnp
import numpy as np
from jax.experimental import pallas as pl
from jax.experimental.pallas import tpu as pltpu

FILTER = 8                    # filter_size of the module
DILATIONS = (1, 4, 8, 16)     # fpm_block_2 .. fpm_block_5
C9 = FILTER + 1               # channels of the dilated blocks (x + residuals)

# ---- packed weight-slab layout (lane offsets, all static) -------------------
OFF_W3 = 0                       # (F, 81)  block 3 weights, 128-aligned chunks
OFF_W4 = 128                     # (F, 81)
OFF_W5 = 256                     # (F, 81)
OFF_WO = 384                     # (F, 40)  output 1x1 conv (BN pre-folded)
OFF_WX2 = 512                    # (F, 9)   block 2 weights (x only)
OFF_W1 = OFF_WX2 + 9             # (F, 1)   block 1 1x1 conv
OFF_B = OFF_W1 + 1               # 6 bias columns: b1,b2,b3,b4,b5,bo'
WSLAB_W = 640                    # total slab width (multiple of 128)


def _round_up(v, m):
    return (v + m - 1) // m * m


def _col_masks(H, W):
    """(12, H*W) f32 column-validity masks; row = block_idx*3 + kw."""
    j = np.arange(H * W) % W
    rows = []
    for d in DILATIONS:
        for kw in range(3):
            dc = (kw - 1) * d
            rows.append(((j + dc >= 0) & (j + dc < W)).astype(np.float32))
    return jnp.asarray(np.stack(rows, axis=0))


def _m_fpm_kernel(x_ref, cm_ref, w_ref, out_ref, pad_ref, *, H, W, PADF, NB):
    HW = H * W
    F = FILTER

    # Zero the halos of the persistent padded-plane scratch once per grid step
    # (NOT guarded by program_id==0: the batch axis is "parallel", each
    # TensorCore owns its own uninitialized scratch).  ~20 KiB aligned stores.
    pad_ref[:, pl.ds(0, PADF)] = jnp.zeros((F + 2, PADF), jnp.float32)
    pad_ref[:, pl.ds(PADF + HW, PADF)] = jnp.zeros((F + 2, PADF), jnp.float32)

    # Loop-invariant weight views: tiny slices of one lane-concatenated slab.
    w1 = w_ref[:, pl.ds(OFF_W1, 1)]                  # (F, 1)
    wo = w_ref[:, pl.ds(OFF_WO, 5 * F)]              # (F, 5F)  BN pre-folded
    b1 = w_ref[:, pl.ds(OFF_B + 0, 1)]
    b2 = w_ref[:, pl.ds(OFF_B + 1, 1)]
    b3 = w_ref[:, pl.ds(OFF_B + 2, 1)]
    b4 = w_ref[:, pl.ds(OFF_B + 3, 1)]
    b5 = w_ref[:, pl.ds(OFF_B + 4, 1)]
    bo = w_ref[:, pl.ds(OFF_B + 5, 1)]

    def dilated_conv(blk, d, w_off, bias, chan_row, nchan):
        """3x3 conv with dilation d over pad_ref[chan_row:chan_row+nchan].
        Per kernel row the taps are fused into one (F, 3*nchan)@(3*nchan, HW)
        MXU dot (x channel folded in with the residuals)."""
        rows = [kh for kh in range(3) if abs((kh - 1) * d) < H]
        cols = [kw for kw in range(3) if abs((kw - 1) * d) < W]
        acc = jnp.zeros((F, HW), jnp.float32)

        def tap(kh, kw):
            dr, dc = (kh - 1) * d, (kw - 1) * d
            win = pad_ref[pl.ds(chan_row, nchan), pl.ds(PADF + dr * W + dc, HW)]
            if dc != 0:                       # column validity (flat-row wrap)
                win = win * cm_ref[pl.ds(blk * 3 + kw, 1), :]
            return win

        for kh in rows:
            if len(cols) == 3:
                rhs = jnp.concatenate([tap(kh, kw) for kw in cols], axis=0)
                lhs = w_ref[:, pl.ds(w_off + kh * 3 * nchan, 3 * nchan)]
                acc = acc + jnp.dot(lhs, rhs, preferred_element_type=jnp.float32)
            else:                             # degenerate taps (e.g. d=16 @ 16x16)
                for kw in cols:
                    lhs = w_ref[:, pl.ds(w_off + (kh * 3 + kw) * nchan, nchan)]
                    acc = acc + jnp.dot(lhs, tap(kh, kw),
                                        preferred_element_type=jnp.float32)
        return acc + bias

    for img in range(NB):                     # unrolled: NB images per grid step
        x = x_ref[img]                        # (1, HW) raw input plane
        relu_x = jnp.maximum(x, 0.0)
        # pad_ref rows: 0..F-1 = ReLU(res_prev), F = ReLU(x), F+1 = raw x
        pad_ref[pl.ds(F, 2), pl.ds(PADF, HW)] = jnp.concatenate([relu_x, x], 0)

        # fpm_block_1: 1x1 conv on raw x (Cin=1 -> rank-1 broadcast FMA)
        res1 = w1 * x + b1                                            # (F, HW)

        # fpm_block_2: 3x3 conv, dilation 1, raw x only (row F+1)
        res2 = dilated_conv(0, 1, OFF_WX2, b2, F + 1, 1)

        # fpm_block_3..5: 3x3 dilated conv over ReLU(cat[x, res_prev]);
        # x + residual channels share one MXU dot per kernel row.
        pad_ref[pl.ds(0, F), pl.ds(PADF, HW)] = jnp.maximum(res2, 0.0)
        res3 = dilated_conv(1, 4, OFF_W3, b3, 0, C9)
        pad_ref[pl.ds(0, F), pl.ds(PADF, HW)] = jnp.maximum(res3, 0.0)
        res4 = dilated_conv(2, 8, OFF_W4, b4, 0, C9)
        pad_ref[pl.ds(0, F), pl.ds(PADF, HW)] = jnp.maximum(res4, 0.0)
        res5 = dilated_conv(3, 16, OFF_W5, b5, 0, C9)

        # fpm_out_block: 1x1 conv (BN folded into wo/bo) + ReLU.
        # Dropout2d(0.25) is identity at inference.
        merged = jnp.concatenate([res1, res2, res3, res4, res5], axis=0)  # (5F, HW)
        y = jnp.dot(wo, merged, preferred_element_type=jnp.float32) + bo
        out_ref[img] = jnp.maximum(y, 0.0)                 # lane-dense store


def m_fpm_forward(x_nchw, params, images_per_step=None):
    """M_FPM forward.  x_nchw: (N, 1, H, W) f32 -> (N, 8, H, W) f32 (NCHW)."""
    N, C, H, W = x_nchw.shape
    assert C == 1, "M_FPM takes a single input channel"
    HW = H * W

    # Flat halo wide enough for the farthest *active* tap (taps whose dilation
    # reaches outside the image degenerate away and are skipped in the kernel).
    reach = 0
    for d in DILATIONS:
        dr = d if d < H else 0
        dc = d if d < W else 0
        reach = max(reach, dr * W + dc)
    PADF = _round_up(max(reach, 1), 128)      # 256 at H=W=16 (was 384)
    PADW = 2 * PADF + HW

    # Batching: amortize per-step overhead + halo zeroing over NB images, but
    # keep >= 2 "parallel" steps by default so both v7x TensorCores get work.
    # Pass images_per_step=N to collapse to a single step on v5e/v6e.
    if images_per_step is None:
        target_steps = min(N, 2)
        images_per_step = -(-N // target_steps)
    NB = max(1, min(images_per_step, N))
    num_steps = -(-N // NB)
    N_pad = num_steps * NB

    cm = _col_masks(H, W)                     # (12, HW)
    x_flat = x_nchw.reshape(N, 1, HW)
    if N_pad != N:
        x_flat = jnp.pad(x_flat, ((0, N_pad - N), (0, 0), (0, 0)))

    kernel = functools.partial(_m_fpm_kernel, H=H, W=W, PADF=PADF, NB=NB)

    grid_spec = pltpu.PrefetchScalarGridSpec(
        num_scalar_prefetch=0,
        grid=(num_steps,),
        in_specs=[
            pl.BlockSpec((NB, 1, HW), lambda n: (n, 0, 0)),      # input planes
            pl.BlockSpec(cm.shape, lambda n: (0, 0)),            # column masks
            pl.BlockSpec((FILTER, WSLAB_W), lambda n: (0, 0)),   # weight slab
        ],
        out_specs=pl.BlockSpec((NB, FILTER, HW), lambda n: (n, 0, 0)),
        scratch_shapes=[
            pltpu.VMEM((FILTER + 2, PADW), jnp.float32),  # zero-halo planes
        ],
    )

    out = pl.pallas_call(
        kernel,
        out_shape=jax.ShapeDtypeStruct((N_pad, FILTER, HW), jnp.float32),
        grid_spec=grid_spec,
        compiler_params=pltpu.CompilerParams(
            dimension_semantics=("parallel",)),          # images are independent
    )(x_flat, cm, params['wslab'])
    return out[:N].reshape(N, FILTER, H, W)


def init_params(key, fs=FILTER):
    assert fs == FILTER
    keys = jax.random.split(key, 14)
    rnd = lambda k, shape: 0.1 * jax.random.normal(k, shape, jnp.float32)

    # HWIO conv weights (reference layout)
    w1 = rnd(keys[0], (1, 1, 1, fs));        b1 = rnd(keys[1], (fs,))
    w2 = rnd(keys[2], (3, 3, 1, fs));        b2 = rnd(keys[3], (fs,))
    w3 = rnd(keys[4], (3, 3, 1 + fs, fs));   b3 = rnd(keys[5], (fs,))
    w4 = rnd(keys[6], (3, 3, 1 + fs, fs));   b4 = rnd(keys[7], (fs,))
    w5 = rnd(keys[8], (3, 3, 1 + fs, fs));   b5 = rnd(keys[9], (fs,))
    wo = rnd(keys[10], (5 * fs, fs));        bo = rnd(keys[11], (fs,))

    gamma = 1.0 + 0.05 * jax.random.normal(keys[12], (fs,), jnp.float32)
    beta = 0.05 * jax.random.normal(keys[13], (fs,), jnp.float32)
    eps = 1e-5
    # eval-mode BatchNorm (running_mean=0, running_var=1 for a fresh module).
    # NOTE: with real trained stats, use scale = gamma/sqrt(var+eps),
    #       shift = beta - mean*scale before the fold below.
    scale = gamma / jnp.sqrt(1.0 + eps)
    shift = beta

    def pack_dil(w):
        # HWIO (3,3,1+fs,fs) -> (fs, 9*(1+fs)), col = (kh*3+kw)*(1+fs)+c,
        # per-tap channel order [res_0..res_{fs-1}, x] (matches pad_ref rows).
        perm = list(range(1, 1 + fs)) + [0]
        return jnp.transpose(w[:, :, perm, :].reshape(9 * (1 + fs), fs))

    # Fold eval-mode BN into the output 1x1 conv (init-time constant fold).
    wo_k = scale[:, None] * jnp.transpose(wo)        # (fs, 5fs)
    bo_k = scale * bo + shift                        # (fs,)

    slab = jnp.zeros((fs, WSLAB_W), jnp.float32)
    slab = slab.at[:, OFF_W3:OFF_W3 + 9 * (1 + fs)].set(pack_dil(w3))
    slab = slab.at[:, OFF_W4:OFF_W4 + 9 * (1 + fs)].set(pack_dil(w4))
    slab = slab.at[:, OFF_W5:OFF_W5 + 9 * (1 + fs)].set(pack_dil(w5))
    slab = slab.at[:, OFF_WO:OFF_WO + 5 * fs].set(wo_k)
    slab = slab.at[:, OFF_WX2:OFF_WX2 + 9].set(jnp.transpose(w2.reshape(9, fs)))
    slab = slab.at[:, OFF_W1:OFF_W1 + 1].set(jnp.transpose(w1.reshape(1, fs)))
    for i, b in enumerate((b1, b2, b3, b4, b5, bo_k)):
        slab = slab.at[:, OFF_B + i:OFF_B + i + 1].set(b[:, None])

    return dict(
        wslab=slab,
        # full weights kept for the pure-JAX reference check
        w1_full=w1, w2_full=w2, w3_full=w3, w4_full=w4, w5_full=w5, wo_full=wo,
        b1_full=b1, b2_full=b2, b3_full=b3, b4_full=b4, b5_full=b5, bo_full=bo,
        scale_full=scale, shift_full=shift,
    )


def reference_forward(x_nchw, p):
    x = jnp.transpose(x_nchw, (0, 2, 3, 1))   # NHWC

    def conv(inp, w_hwio, b, dil, pad):
        y = jax.lax.conv_general_dilated(
            inp, w_hwio, window_strides=(1, 1),
            padding=[(pad, pad), (pad, pad)],
            rhs_dilation=(dil, dil),
            dimension_numbers=("NHWC", "HWIO", "NHWC"))
        return y + b.reshape(1, 1, 1, -1)

    relu = lambda a: jnp.maximum(a, 0.0)
    res1 = conv(x, p['w1_full'], p['b1_full'], 1, 0)
    res2 = conv(x, p['w2_full'], p['b2_full'], 1, 1)
    res3 = conv(relu(jnp.concatenate([x, res2], -1)), p['w3_full'], p['b3_full'], 4, 4)
    res4 = conv(relu(jnp.concatenate([x, res3], -1)), p['w4_full'], p['b4_full'], 8, 8)
    res5 = conv(relu(jnp.concatenate([x, res4], -1)), p['w5_full'], p['b5_full'], 16, 16)
    merged = jnp.concatenate([res1, res2, res3, res4, res5], -1)
    y = conv(merged, p['wo_full'].reshape(1, 1, 5 * FILTER, FILTER), p['bo_full'], 1, 0)
    y = relu(y * p['scale_full'].reshape(1, 1, 1, -1)
             + p['shift_full'].reshape(1, 1, 1, -1))
    return jnp.transpose(y, (0, 3, 1, 2))     # back to NCHW


if __name__ == "__main__":
    key = jax.random.PRNGKey(0)
    kx, kp = jax.random.split(key)
    N, H, W = 2, 16, 16
    x = jax.random.normal(kx, (N, 1, H, W), jnp.float32)   # NCHW, matches module
    params = init_params(kp)
    ref = reference_forward(x, params)

    # Default: 2 parallel grid steps (v7x keeps both TensorCores busy).
    out = jax.block_until_ready(m_fpm_forward(x, params))
    np.testing.assert_allclose(np.asarray(out), np.asarray(ref), rtol=1e-4, atol=1e-4)

    # Batched path: all images in one grid step (v5e/v6e-style amortization).
    out_b = jax.block_until_ready(m_fpm_forward(x, params, images_per_step=N))
    np.testing.assert_allclose(np.asarray(out_b), np.asarray(ref), rtol=1e-4, atol=1e-4)

    print("KERNEL_OK")
</pallas_src>

<mosaic_0001>
module attributes {stable_mosaic.version = 11 : i64} {
  func.func @_m_fpm_kernel(%arg0: i32, %arg1: memref<1x1x256xf32, #tpu.memory_space<vmem>>, %arg2: memref<12x256xf32, #tpu.memory_space<vmem>>, %arg3: memref<8x640xf32, #tpu.memory_space<vmem>>, %arg4: memref<1x8x256xf32, #tpu.memory_space<vmem>>, %arg5: memref<10x768xf32, #tpu.memory_space<vmem>>) attributes {dimension_semantics = [#tpu.dimension_semantics<parallel>], iteration_bounds = array<i64: 2>, scalar_prefetch = 0 : i64, scratch_operands = 1 : i64, tpu.core_type = #tpu.core_type<tc>, window_params = [{transform_indices = @transform_0, window_bounds = array<i64: 1, 1, 256>}, {pipeline_mode = #tpu.pipeline_mode<synchronous>, transform_indices = @transform_1, window_bounds = array<i64: 12, 256>}, {pipeline_mode = #tpu.pipeline_mode<synchronous>, transform_indices = @transform_2, window_bounds = array<i64: 8, 640>}, {transform_indices = @transform_3, window_bounds = array<i64: 1, 8, 256>}]} {
    %cst = arith.constant 0.000000e+00 : f32
    %0 = vector.broadcast %cst : f32 to vector<10x256xf32>
    %c0 = arith.constant 0 : index
    %c0_0 = arith.constant 0 : index
    %1 = vector.load %arg5[%c0, %c0_0] : memref<10x768xf32, #tpu.memory_space<vmem>>, vector<10x256xf32>
    tpu.vector_store %arg5[%c0, %c0_0], %0 {strides = array<i32>} : memref<10x768xf32, #tpu.memory_space<vmem>>, vector<10x256xf32>,
    %cst_1 = arith.constant 0.000000e+00 : f32
    %2 = vector.broadcast %cst_1 : f32 to vector<10x256xf32>
    %c0_2 = arith.constant 0 : index
    %c512 = arith.constant 512 : index
    %3 = vector.load %arg5[%c0_2, %c512] : memref<10x768xf32, #tpu.memory_space<vmem>>, vector<10x256xf32>
    tpu.vector_store %arg5[%c0_2, %c512], %2 {strides = array<i32>} : memref<10x768xf32, #tpu.memory_space<vmem>>, vector<10x256xf32>,
    %c0_3 = arith.constant 0 : index
    %c521 = arith.constant 521 : index
    %4 = vector.load %arg3[%c0_3, %c521] : memref<8x640xf32, #tpu.memory_space<vmem>>, vector<8x1xf32>
    %c0_4 = arith.constant 0 : index
    %c384 = arith.constant 384 : index
    %5 = vector.load %arg3[%c0_4, %c384] : memref<8x640xf32, #tpu.memory_space<vmem>>, vector<8x40xf32>
    %c0_5 = arith.constant 0 : index
    %c522 = arith.constant 522 : index
    %6 = vector.load %arg3[%c0_5, %c522] : memref<8x640xf32, #tpu.memory_space<vmem>>, vector<8x1xf32>
    %c0_6 = arith.constant 0 : index
    %c523 = arith.constant 523 : index
    %7 = vector.load %arg3[%c0_6, %c523] : memref<8x640xf32, #tpu.memory_space<vmem>>, vector<8x1xf32>
    %c0_7 = arith.constant 0 : index
    %c524 = arith.constant 524 : index
    %8 = vector.load %arg3[%c0_7, %c524] : memref<8x640xf32, #tpu.memory_space<vmem>>, vector<8x1xf32>
    %c0_8 = arith.constant 0 : index
    %c525 = arith.constant 525 : index
    %9 = vector.load %arg3[%c0_8, %c525] : memref<8x640xf32, #tpu.memory_space<vmem>>, vector<8x1xf32>
    %c0_9 = arith.constant 0 : index
    %c526 = arith.constant 526 : index
    %10 = vector.load %arg3[%c0_9, %c526] : memref<8x640xf32, #tpu.memory_space<vmem>>, vector<8x1xf32>
    %c0_10 = arith.constant 0 : index
    %c527 = arith.constant 527 : index
    %11 = vector.load %arg3[%c0_10, %c527] : memref<8x640xf32, #tpu.memory_space<vmem>>, vector<8x1xf32>
    %c0_11 = arith.constant 0 : index
    %c0_12 = arith.constant 0 : index
    %c0_13 = arith.constant 0 : index
    %12 = vector.load %arg1[%c0_11, %c0_12, %c0_13] : memref<1x1x256xf32, #tpu.memory_space<vmem>>, vector<1x1x256xf32>
    %13 = vector.shape_cast %12 : vector<1x1x256xf32> to vector<1x256xf32>
    %cst_14 = arith.constant 0.000000e+00 : f32
    %14 = vector.broadcast %cst_14 : f32 to vector<1x256xf32>
    %15 = arith.maximumf %13, %14 : vector<1x256xf32>
    %16 = tpu.concatenate %15, %13 in 0 : vector<1x256xf32>, vector<1x256xf32> -> vector<2x256xf32>
    %c8 = arith.constant 8 : index
    %c256 = arith.constant 256 : index
    %17 = vector.load %arg5[%c8, %c256] : memref<10x768xf32, #tpu.memory_space<vmem>>, vector<2x256xf32>
    tpu.vector_store %arg5[%c8, %c256], %16 {strides = array<i32>} : memref<10x768xf32, #tpu.memory_space<vmem>>, vector<2x256xf32>,
    %18 = vector.broadcast %4 : vector<8x1xf32> to vector<8x256xf32>
    %19 = vector.broadcast %13 : vector<1x256xf32> to vector<8x256xf32>
    %20 = arith.mulf %18, %19 : vector<8x256xf32>
    %21 = vector.broadcast %6 : vector<8x1xf32> to vector<8x256xf32>
    %22 = arith.addf %20, %21 : vector<8x256xf32>
    %cst_15 = arith.constant 0.000000e+00 : f32
    %23 = vector.broadcast %cst_15 : f32 to vector<8x256xf32>
    %c9 = arith.constant 9 : index
    %c239 = arith.constant 239 : index
    %24 = vector.load %arg5[%c9, %c239] : memref<10x768xf32, #tpu.memory_space<vmem>>, vector<1x256xf32>
    %c0_16 = arith.constant 0 : index
    %c0_17 = arith.constant 0 : index
    %25 = vector.load %arg2[%c0_16, %c0_17] : memref<12x256xf32, #tpu.memory_space<vmem>>, vector<1x256xf32>
    %26 = arith.mulf %24, %25 : vector<1x256xf32>
    %c9_18 = arith.constant 9 : index
    %c240 = arith.constant 240 : index
    %27 = vector.load %arg5[%c9_18, %c240] : memref<10x768xf32, #tpu.memory_space<vmem>>, vector<1x256xf32>
    %c9_19 = arith.constant 9 : index
    %c241 = arith.constant 241 : index
    %28 = vector.load %arg5[%c9_19, %c241] : memref<10x768xf32, #tpu.memory_space<vmem>>, vector<1x256xf32>
    %c2 = arith.constant 2 : index
    %c0_20 = arith.constant 0 : index
    %29 = vector.load %arg2[%c2, %c0_20] : memref<12x256xf32, #tpu.memory_space<vmem>>, vector<1x256xf32>
    %30 = arith.mulf %28, %29 : vector<1x256xf32>
    %31 = tpu.concatenate %26, %27, %30 in 0 : vector<1x256xf32>, vector<1x256xf32>, vector<1x256xf32> -> vector<3x256xf32>
    %c0_21 = arith.constant 0 : index
    %c512_22 = arith.constant 512 : index
    %32 = vector.load %arg3[%c0_21, %c512_22] : memref<8x640xf32, #tpu.memory_space<vmem>>, vector<8x3xf32>
    %cst_23 = arith.constant dense<0.000000e+00> : vector<8x256xf32>
    %33 = tpu.matmul %32, %31, %cst_23 {dimension_numbers = #tpu.dot_dimension_numbers<[1], [0], [0], [1], [0, 0, 1, 1], [], []>} : vector<8x3xf32>, vector<3x256xf32>, vector<8x256xf32> -> vector<8x256xf32>
    %34 = arith.addf %23, %33 : vector<8x256xf32>
    %c9_24 = arith.constant 9 : index
    %c255 = arith.constant 255 : index
    %35 = vector.load %arg5[%c9_24, %c255] : memref<10x768xf32, #tpu.memory_space<vmem>>, vector<1x256xf32>
    %c0_25 = arith.constant 0 : index
    %c0_26 = arith.constant 0 : index
    %36 = vector.load %arg2[%c0_25, %c0_26] : memref<12x256xf32, #tpu.memory_space<vmem>>, vector<1x256xf32>
    %37 = arith.mulf %35, %36 : vector<1x256xf32>
    %c9_27 = arith.constant 9 : index
    %c256_28 = arith.constant 256 : index
    %38 = vector.load %arg5[%c9_27, %c256_28] : memref<10x768xf32, #tpu.memory_space<vmem>>, vector<1x256xf32>
    %c9_29 = arith.constant 9 : index
    %c257 = arith.constant 257 : index
    %39 = vector.load %arg5[%c9_29, %c257] : memref<10x768xf32, #tpu.memory_space<vmem>>, vector<1x256xf32>
    %c2_30 = arith.constant 2 : index
    %c0_31 = arith.constant 0 : index
    %40 = vector.load %arg2[%c2_30, %c0_31] : memref<12x256xf32, #tpu.memory_space<vmem>>, vector<1x256xf32>
    %41 = arith.mulf %39, %40 : vector<1x256xf32>
    %42 = tpu.concatenate %37, %38, %41 in 0 : vector<1x256xf32>, vector<1x256xf32>, vector<1x256xf32> -> vector<3x256xf32>
    %c0_32 = arith.constant 0 : index
    %c515 = arith.constant 515 : index
    %43 = vector.load %arg3[%c0_32, %c515] : memref<8x640xf32, #tpu.memory_space<vmem>>, vector<8x3xf32>
    %cst_33 = arith.constant dense<0.000000e+00> : vector<8x256xf32>
    %44 = tpu.matmul %43, %42, %cst_33 {dimension_numbers = #tpu.dot_dimension_numbers<[1], [0], [0], [1], [0, 0, 1, 1], [], []>} : vector<8x3xf32>, vector<3x256xf32>, vector<8x256xf32> -> vector<8x256xf32>
    %45 = arith.addf %34, %44 : vector<8x256xf32>
    %c9_34 = arith.constant 9 : index
    %c271 = arith.constant 271 : index
    %46 = vector.load %arg5[%c9_34, %c271] : memref<10x768xf32, #tpu.memory_space<vmem>>, vector<1x256xf32>
    %c0_35 = arith.constant 0 : index
    %c0_36 = arith.constant 0 : index
    %47 = vector.load %arg2[%c0_35, %c0_36] : memref<12x256xf32, #tpu.memory_space<vmem>>, vector<1x256xf32>
    %48 = arith.mulf %46, %47 : vector<1x256xf32>
    %c9_37 = arith.constant 9 : index
    %c272 = arith.constant 272 : index
    %49 = vector.load %arg5[%c9_37, %c272] : memref<10x768xf32, #tpu.memory_space<vmem>>, vector<1x256xf32>
    %c9_38 = arith.constant 9 : index
    %c273 = arith.constant 273 : index
    %50 = vector.load %arg5[%c9_38, %c273] : memref<10x768xf32, #tpu.memory_space<vmem>>, vector<1x256xf32>
    %c2_39 = arith.constant 2 : index
    %c0_40 = arith.constant 0 : index
    %51 = vector.load %arg2[%c2_39, %c0_40] : memref<12x256xf32, #tpu.memory_space<vmem>>, vector<1x256xf32>
    %52 = arith.mulf %50, %51 : vector<1x256xf32>
    %53 = tpu.concatenate %48, %49, %52 in 0 : vector<1x256xf32>, vector<1x256xf32>, vector<1x256xf32> -> vector<3x256xf32>
    %c0_41 = arith.constant 0 : index
    %c518 = arith.constant 518 : index
    %54 = vector.load %arg3[%c0_41, %c518] : memref<8x640xf32, #tpu.memory_space<vmem>>, vector<8x3xf32>
    %cst_42 = arith.constant dense<0.000000e+00> : vector<8x256xf32>
    %55 = tpu.matmul %54, %53, %cst_42 {dimension_numbers = #tpu.dot_dimension_numbers<[1], [0], [0], [1], [0, 0, 1, 1], [], []>} : vector<8x3xf32>, vector<3x256xf32>, vector<8x256xf32> -> vector<8x256xf32>
    %56 = arith.addf %45, %55 : vector<8x256xf32>
    %57 = vector.broadcast %7 : vector<8x1xf32> to vector<8x256xf32>
    %58 = arith.addf %56, %57 : vector<8x256xf32>
    %cst_43 = arith.constant 0.000000e+00 : f32
    %59 = vector.broadcast %cst_43 : f32 to vector<8x256xf32>
    %60 = arith.maximumf %58, %59 : vector<8x256xf32>
    %c0_44 = arith.constant 0 : index
    %c256_45 = arith.constant 256 : index
    %61 = vector.load %arg5[%c0_44, %c256_45] : memref<10x768xf32, #tpu.memory_space<vmem>>, vector<8x256xf32>
    tpu.vector_store %arg5[%c0_44, %c256_45], %60 {strides = array<i32>} : memref<10x768xf32, #tpu.memory_space<vmem>>, vector<8x256xf32>,
    %cst_46 = arith.constant 0.000000e+00 : f32
    %62 = vector.broadcast %cst_46 : f32 to vector<8x256xf32>
    %c0_47 = arith.constant 0 : index
    %c188 = arith.constant 188 : index
    %63 = vector.load %arg5[%c0_47, %c188] : memref<10x768xf32, #tpu.memory_space<vmem>>, vector<9x256xf32>
    %c3 = arith.constant 3 : index
    %c0_48 = arith.constant 0 : index
    %64 = vector.load %arg2[%c3, %c0_48] : memref<12x256xf32, #tpu.memory_space<vmem>>, vector<1x256xf32>
    %65 = vector.broadcast %64 : vector<1x256xf32> to vector<9x256xf32>
    %66 = arith.mulf %63, %65 : vector<9x256xf32>
    %c0_49 = arith.constant 0 : index
    %c192 = arith.constant 192 : index
    %67 = vector.load %arg5[%c0_49, %c192] : memref<10x768xf32, #tpu.memory_space<vmem>>, vector<9x256xf32>
    %c0_50 = arith.constant 0 : index
    %c196 = arith.constant 196 : index
    %68 = vector.load %arg5[%c0_50, %c196] : memref<10x768xf32, #tpu.memory_space<vmem>>, vector<9x256xf32>
    %c5 = arith.constant 5 : index
    %c0_51 = arith.constant 0 : index
    %69 = vector.load %arg2[%c5, %c0_51] : memref<12x256xf32, #tpu.memory_space<vmem>>, vector<1x256xf32>
    %70 = vector.broadcast %69 : vector<1x256xf32> to vector<9x256xf32>
    %71 = arith.mulf %68, %70 : vector<9x256xf32>
    %72 = tpu.concatenate %66, %67, %71 in 0 : vector<9x256xf32>, vector<9x256xf32>, vector<9x256xf32> -> vector<27x256xf32>
    %c0_52 = arith.constant 0 : index
    %c0_53 = arith.constant 0 : index
    %73 = vector.load %arg3[%c0_52, %c0_53] : memref<8x640xf32, #tpu.memory_space<vmem>>, vector<8x27xf32>
    %cst_54 = arith.constant dense<0.000000e+00> : vector<8x256xf32>
    %74 = tpu.matmul %73, %72, %cst_54 {dimension_numbers = #tpu.dot_dimension_numbers<[1], [0], [0], [1], [0, 0, 1, 1], [], []>} : vector<8x27xf32>, vector<27x256xf32>, vector<8x256xf32> -> vector<8x256xf32>
    %75 = arith.addf %62, %74 : vector<8x256xf32>
    %c0_55 = arith.constant 0 : index
    %c252 = arith.constant 252 : index
    %76 = vector.load %arg5[%c0_55, %c252] : memref<10x768xf32, #tpu.memory_space<vmem>>, vector<9x256xf32>
    %c3_56 = arith.constant 3 : index
    %c0_57 = arith.constant 0 : index
    %77 = vector.load %arg2[%c3_56, %c0_57] : memref<12x256xf32, #tpu.memory_space<vmem>>, vector<1x256xf32>
    %78 = vector.broadcast %77 : vector<1x256xf32> to vector<9x256xf32>
    %79 = arith.mulf %76, %78 : vector<9x256xf32>
    %c0_58 = arith.constant 0 : index
    %c256_59 = arith.constant 256 : index
    %80 = vector.load %arg5[%c0_58, %c256_59] : memref<10x768xf32, #tpu.memory_space<vmem>>, vector<9x256xf32>
    %c0_60 = arith.constant 0 : index
    %c260 = arith.constant 260 : index
    %81 = vector.load %arg5[%c0_60, %c260] : memref<10x768xf32, #tpu.memory_space<vmem>>, vector<9x256xf32>
    %c5_61 = arith.constant 5 : index
    %c0_62 = arith.constant 0 : index
    %82 = vector.load %arg2[%c5_61, %c0_62] : memref<12x256xf32, #tpu.memory_space<vmem>>, vector<1x256xf32>
    %83 = vector.broadcast %82 : vector<1x256xf32> to vector<9x256xf32>
    %84 = arith.mulf %81, %83 : vector<9x256xf32>
    %85 = tpu.concatenate %79, %80, %84 in 0 : vector<9x256xf32>, vector<9x256xf32>, vector<9x256xf32> -> vector<27x256xf32>
    %c0_63 = arith.constant 0 : index
    %c27 = arith.constant 27 : index
    %86 = vector.load %arg3[%c0_63, %c27] : memref<8x640xf32, #tpu.memory_space<vmem>>, vector<8x27xf32>
    %cst_64 = arith.constant dense<0.000000e+00> : vector<8x256xf32>
    %87 = tpu.matmul %86, %85, %cst_64 {dimension_numbers = #tpu.dot_dimension_numbers<[1], [0], [0], [1], [0, 0, 1, 1], [], []>} : vector<8x27xf32>, vector<27x256xf32>, vector<8x256xf32> -> vector<8x256xf32>
    %88 = arith.addf %75, %87 : vector<8x256xf32>
    %c0_65 = arith.constant 0 : index
    %c316 = arith.constant 316 : index
    %89 = vector.load %arg5[%c0_65, %c316] : memref<10x768xf32, #tpu.memory_space<vmem>>, vector<9x256xf32>
    %c3_66 = arith.constant 3 : index
    %c0_67 = arith.constant 0 : index
    %90 = vector.load %arg2[%c3_66, %c0_67] : memref<12x256xf32, #tpu.memory_space<vmem>>, vector<1x256xf32>
    %91 = vector.broadcast %90 : vector<1x256xf32> to vector<9x256xf32>
    %92 = arith.mulf %89, %91 : vector<9x256xf32>
    %c0_68 = arith.constant 0 : index
    %c320 = arith.constant 320 : index
    %93 = vector.load %arg5[%c0_68, %c320] : memref<10x768xf32, #tpu.memory_space<vmem>>, vector<9x256xf32>
    %c0_69 = arith.constant 0 : index
    %c324 = arith.constant 324 : index
    %94 = vector.load %arg5[%c0_69, %c324] : memref<10x768xf32, #tpu.memory_space<vmem>>, vector<9x256xf32>
    %c5_70 = arith.constant 5 : index
    %c0_71 = arith.constant 0 : index
    %95 = vector.load %arg2[%c5_70, %c0_71] : memref<12x256xf32, #tpu.memory_space<vmem>>, vector<1x256xf32>
    %96 = vector.broadcast %95 : vector<1x256xf32> to vector<9x256xf32>
    %97 = arith.mulf %94, %96 : vector<9x256xf32>
    %98 = tpu.concatenate %92, %93, %97 in 0 : vector<9x256xf32>, vector<9x256xf32>, vector<9x256xf32> -> vector<27x256xf32>
    %c0_72 = arith.constant 0 : index
    %c54 = arith.constant 54 : index
    %99 = vector.load %arg3[%c0_72, %c54] : memref<8x640xf32, #tpu.memory_space<vmem>>, vector<8x27xf32>
    %cst_73 = arith.constant dense<0.000000e+00> : vector<8x256xf32>
    %100 = tpu.matmul %99, %98, %cst_73 {dimension_numbers = #tpu.dot_dimension_numbers<[1], [0], [0], [1], [0, 0, 1, 1], [], []>} : vector<8x27xf32>, vector<27x256xf32>, vector<8x256xf32> -> vector<8x256xf32>
    %101 = arith.addf %88, %100 : vector<8x256xf32>
    %102 = vector.broadcast %8 : vector<8x1xf32> to vector<8x256xf32>
    %103 = arith.addf %101, %102 : vector<8x256xf32>
    %cst_74 = arith.constant 0.000000e+00 : f32
    %104 = vector.broadcast %cst_74 : f32 to vector<8x256xf32>
    %105 = arith.maximumf %103, %104 : vector<8x256xf32>
    %c0_75 = arith.constant 0 : index
    %c256_76 = arith.constant 256 : index
    %106 = vector.load %arg5[%c0_75, %c256_76] : memref<10x768xf32, #tpu.memory_space<vmem>>, vector<8x256xf32>
    tpu.vector_store %arg5[%c0_75, %c256_76], %105 {strides = array<i32>} : memref<10x768xf32, #tpu.memory_space<vmem>>, vector<8x256xf32>,
    %cst_77 = arith.constant 0.000000e+00 : f32
    %107 = vector.broadcast %cst_77 : f32 to vector<8x256xf32>
    %c0_78 = arith.constant 0 : index
    %c120 = arith.constant 120 : index
    %108 = vector.load %arg5[%c0_78, %c120] : memref<10x768xf32, #tpu.memory_space<vmem>>, vector<9x256xf32>
    %c6 = arith.constant 6 : index
    %c0_79 = arith.constant 0 : index
    %109 = vector.load %arg2[%c6, %c0_79] : memref<12x256xf32, #tpu.memory_space<vmem>>, vector<1x256xf32>
    %110 = vector.broadcast %109 : vector<1x256xf32> to vector<9x256xf32>
    %111 = arith.mulf %108, %110 : vector<9x256xf32>
    %c0_80 = arith.constant 0 : index
    %c128 = arith.constant 128 : index
    %112 = vector.load %arg5[%c0_80, %c128] : memref<10x768xf32, #tpu.memory_space<vmem>>, vector<9x256xf32>
    %c0_81 = arith.constant 0 : index
    %c136 = arith.constant 136 : index
    %113 = vector.load %arg5[%c0_81, %c136] : memref<10x768xf32, #tpu.memory_space<vmem>>, vector<9x256xf32>
    %c8_82 = arith.constant 8 : index
    %c0_83 = arith.constant 0 : index
    %114 = vector.load %arg2[%c8_82, %c0_83] : memref<12x256xf32, #tpu.memory_space<vmem>>, vector<1x256xf32>
    %115 = vector.broadcast %114 : vector<1x256xf32> to vector<9x256xf32>
    %116 = arith.mulf %113, %115 : vector<9x256xf32>
    %117 = tpu.concatenate %111, %112, %116 in 0 : vector<9x256xf32>, vector<9x256xf32>, vector<9x256xf32> -> vector<27x256xf32>
    %c0_84 = arith.constant 0 : index
    %c128_85 = arith.constant 128 : index
    %118 = vector.load %arg3[%c0_84, %c128_85] : memref<8x640xf32, #tpu.memory_space<vmem>>, vector<8x27xf32>
    %cst_86 = arith.constant dense<0.000000e+00> : vector<8x256xf32>
    %119 = tpu.matmul %118, %117, %cst_86 {dimension_numbers = #tpu.dot_dimension_numbers<[1], [0], [0], [1], [0, 0, 1, 1], [], []>} : vector<8x27xf32>, vector<27x256xf32>, vector<8x256xf32> -> vector<8x256xf32>
    %120 = arith.addf %107, %119 : vector<8x256xf32>
    %c0_87 = arith.constant 0 : index
    %c248 = arith.constant 248 : index
    %121 = vector.load %arg5[%c0_87, %c248] : memref<10x768xf32, #tpu.memory_space<vmem>>, vector<9x256xf32>
    %c6_88 = arith.constant 6 : index
    %c0_89 = arith.constant 0 : index
    %122 = vector.load %arg2[%c6_88, %c0_89] : memref<12x256xf32, #tpu.memory_space<vmem>>, vector<1x256xf32>
    %123 = vector.broadcast %122 : vector<1x256xf32> to vector<9x256xf32>
    %124 = arith.mulf %121, %123 : vector<9x256xf32>
    %c0_90 = arith.constant 0 : index
    %c256_91 = arith.constant 256 : index
    %125 = vector.load %arg5[%c0_90, %c256_91] : memref<10x768xf32, #tpu.memory_space<vmem>>, vector<9x256xf32>
    %c0_92 = arith.constant 0 : index
    %c264 = arith.constant 264 : index
    %126 = vector.load %arg5[%c0_92, %c264] : memref<10x768xf32, #tpu.memory_space<vmem>>, vector<9x256xf32>
    %c8_93 = arith.constant 8 : index
    %c0_94 = arith.constant 0 : index
    %127 = vector.load %arg2[%c8_93, %c0_94] : memref<12x256xf32, #tpu.memory_space<vmem>>, vector<1x256xf32>
    %128 = vector.broadcast %127 : vector<1x256xf32> to vector<9x256xf32>
    %129 = arith.mulf %126, %128 : vector<9x256xf32>
    %130 = tpu.concatenate %124, %125, %129 in 0 : vector<9x256xf32>, vector<9x256xf32>, vector<9x256xf32> -> vector<27x256xf32>
    %c0_95 = arith.constant 0 : index
    %c155 = arith.constant 155 : index
    %131 = vector.load %arg3[%c0_95, %c155] : memref<8x640xf32, #tpu.memory_space<vmem>>, vector<8x27xf32>
    %cst_96 = arith.constant dense<0.000000e+00> : vector<8x256xf32>
    %132 = tpu.matmul %131, %130, %cst_96 {dimension_numbers = #tpu.dot_dimension_numbers<[1], [0], [0], [1], [0, 0, 1, 1], [], []>} : vector<8x27xf32>, vector<27x256xf32>, vector<8x256xf32> -> vector<8x256xf32>
    %133 = arith.addf %120, %132 : vector<8x256xf32>
    %c0_97 = arith.constant 0 : index
    %c376 = arith.constant 376 : index
    %134 = vector.load %arg5[%c0_97, %c376] : memref<10x768xf32, #tpu.memory_space<vmem>>, vector<9x256xf32>
    %c6_98 = arith.constant 6 : index
    %c0_99 = arith.constant 0 : index
    %135 = vector.load %arg2[%c6_98, %c0_99] : memref<12x256xf32, #tpu.memory_space<vmem>>, vector<1x256xf32>
    %136 = vector.broadcast %135 : vector<1x256xf32> to vector<9x256xf32>
    %137 = arith.mulf %134, %136 : vector<9x256xf32>
    %c0_100 = arith.constant 0 : index
    %c384_101 = arith.constant 384 : index
    %138 = vector.load %arg5[%c0_100, %c384_101] : memref<10x768xf32, #tpu.memory_space<vmem>>, vector<9x256xf32>
    %c0_102 = arith.constant 0 : index
    %c392 = arith.constant 392 : index
    %139 = vector.load %arg5[%c0_102, %c392] : memref<10x768xf32, #tpu.memory_space<vmem>>, vector<9x256xf32>
    %c8_103 = arith.constant 8 : index
    %c0_104 = arith.constant 0 : index
    %140 = vector.load %arg2[%c8_103, %c0_104] : memref<12x256xf32, #tpu.memory_space<vmem>>, vector<1x256xf32>
    %141 = vector.broadcast %140 : vector<1x256xf32> to vector<9x256xf32>
    %142 = arith.mulf %139, %141 : vector<9x256xf32>
    %143 = tpu.concatenate %137, %138, %142 in 0 : vector<9x256xf32>, vector<9x256xf32>, vector<9x256xf32> -> vector<27x256xf32>
    %c0_105 = arith.constant 0 : index
    %c182 = arith.constant 182 : index
    %144 = vector.load %arg3[%c0_105, %c182] : memref<8x640xf32, #tpu.memory_space<vmem>>, vector<8x27xf32>
    %cst_106 = arith.constant dense<0.000000e+00> : vector<8x256xf32>
    %145 = tpu.matmul %144, %143, %cst_106 {dimension_numbers = #tpu.dot_dimension_numbers<[1], [0], [0], [1], [0, 0, 1, 1], [], []>} : vector<8x27xf32>, vector<27x256xf32>, vector<8x256xf32> -> vector<8x256xf32>
    %146 = arith.addf %133, %145 : vector<8x256xf32>
    %147 = vector.broadcast %9 : vector<8x1xf32> to vector<8x256xf32>
    %148 = arith.addf %146, %147 : vector<8x256xf32>
    %cst_107 = arith.constant 0.000000e+00 : f32
    %149 = vector.broadcast %cst_107 : f32 to vector<8x256xf32>
    %150 = arith.maximumf %148, %149 : vector<8x256xf32>
    %c0_108 = arith.constant 0 : index
    %c256_109 = arith.constant 256 : index
    %151 = vector.load %arg5[%c0_108, %c256_109] : memref<10x768xf32, #tpu.memory_space<vmem>>, vector<8x256xf32>
    tpu.vector_store %arg5[%c0_108, %c256_109], %150 {strides = array<i32>} : memref<10x768xf32, #tpu.memory_space<vmem>>, vector<8x256xf32>,
    %cst_110 = arith.constant 0.000000e+00 : f32
    %152 = vector.broadcast %cst_110 : f32 to vector<8x256xf32>
    %c0_111 = arith.constant 0 : index
    %c292 = arith.constant 292 : index
    %153 = vector.load %arg3[%c0_111, %c292] : memref<8x640xf32, #tpu.memory_space<vmem>>, vector<8x9xf32>
    %c0_112 = arith.constant 0 : index
    %c256_113 = arith.constant 256 : index
    %154 = vector.load %arg5[%c0_112, %c256_113] : memref<10x768xf32, #tpu.memory_space<vmem>>, vector<9x256xf32>
    %cst_114 = arith.constant dense<0.000000e+00> : vector<8x256xf32>
    %155 = tpu.matmul %153, %154, %cst_114 {dimension_numbers = #tpu.dot_dimension_numbers<[1], [0], [0], [1], [0, 0, 1, 1], [], []>} : vector<8x9xf32>, vector<9x256xf32>, vector<8x256xf32> -> vector<8x256xf32>
    %156 = arith.addf %152, %155 : vector<8x256xf32>
    %157 = vector.broadcast %10 : vector<8x1xf32> to vector<8x256xf32>
    %158 = arith.addf %156, %157 : vector<8x256xf32>
    %159 = tpu.concatenate %22, %58, %103, %148, %158 in 0 : vector<8x256xf32>, vector<8x256xf32>, vector<8x256xf32>, vector<8x256xf32>, vector<8x256xf32> -> vector<40x256xf32>
    %cst_115 = arith.constant dense<0.000000e+00> : vector<8x256xf32>
    %160 = tpu.matmul %5, %159, %cst_115 {dimension_numbers = #tpu.dot_dimension_numbers<[1], [0], [0], [1], [0, 0, 1, 1], [], []>} : vector<8x40xf32>, vector<40x256xf32>, vector<8x256xf32> -> vector<8x256xf32>
    %161 = vector.broadcast %11 : vector<8x1xf32> to vector<8x256xf32>
    %162 = arith.addf %160, %161 : vector<8x256xf32>
    %cst_116 = arith.constant 0.000000e+00 : f32
    %163 = vector.broadcast %cst_116 : f32 to vector<8x256xf32>
    %164 = arith.maximumf %162, %163 : vector<8x256xf32>
    %c0_117 = arith.constant 0 : index
    %c0_118 = arith.constant 0 : index
    %c0_119 = arith.constant 0 : index
    %165 = vector.load %arg4[%c0_117, %c0_118, %c0_119] : memref<1x8x256xf32, #tpu.memory_space<vmem>>, vector<1x8x256xf32>
    %166 = vector.shape_cast %165 : vector<1x8x256xf32> to vector<8x256xf32>
    %167 = vector.shape_cast %164 : vector<8x256xf32> to vector<1x8x256xf32>
    tpu.vector_store %arg4[%c0_117, %c0_118, %c0_119], %167 {strides = array<i32>} : memref<1x8x256xf32, #tpu.memory_space<vmem>>, vector<1x8x256xf32>,
    return
  }
  func.func @transform_0(%arg0: i32) -> (i32, i32, i32) {
    %c0_i32 = arith.constant 0 : i32
    %c0_i32_0 = arith.constant 0 : i32
    %c0_i32_1 = arith.constant 0 : i32
    return %arg0, %c0_i32, %c0_i32_0 : i32, i32, i32
  }
  func.func @transform_1(%arg0: i32) -> (i32, i32) {
    %c0_i32 = arith.constant 0 : i32
    %c0_i32_0 = arith.constant 0 : i32
    %c0_i32_1 = arith.constant 0 : i32
    return %c0_i32, %c0_i32_0 : i32, i32
  }
  func.func @transform_2(%arg0: i32) -> (i32, i32) {
    %c0_i32 = arith.constant 0 : i32
    %c0_i32_0 = arith.constant 0 : i32
    %c0_i32_1 = arith.constant 0 : i32
    return %c0_i32, %c0_i32_0 : i32, i32
  }
  func.func @transform_3(%arg0: i32) -> (i32, i32, i32) {
    %c0_i32 = arith.constant 0 : i32
    %c0_i32_0 = arith.constant 0 : i32
    %c0_i32_1 = arith.constant 0 : i32
    return %arg0, %c0_i32, %c0_i32_0 : i32, i32, i32
  }
}

</mosaic_0001>

<llo_original>
// kernel: tpu_custom_call.1
$region0: #{tpu_custom_call.1}
  #allocation0 [shape = 'u32[]', space=smem, size = 0x4, offset = 0x4, fixed_abs, tag = 'smem constant byte address 0x4 - core index']
  #allocation1 [shape = 'u32[144,128]{1,0:T(1,128)}', space=vmem, size = 0x12000, scoped, tag = 'internal scratch']
  #allocation2 [shape = 'f32[10,768]{1,0:T(8,128)}', space=vmem, size = 0xc000, scoped, tag = 'scratch operand']
  %s0 = inlined_call_operand.hbm [shape: f32[2,1,256], index: 0, kind: input, shape index: {}]
  %s1 = inlined_call_operand.hbm [shape: f32[12,256], index: 1, kind: input, shape index: {}]
  %s2 = inlined_call_operand.hbm [shape: f32[8,640], index: 2, kind: input, shape index: {}]
  %s3 = inlined_call_operand.hbm [shape: f32[2,8,256], index: 3, kind: output, shape index: {}]
  %s4 = sld [smem:[#allocation0]]
  $region57: #{tpu_custom_call.1} parent=0
    _
  %s6 = ssub.s32 1, %s4
  %s7 = scalar_select 0, %s6, %s4
  $region1: #{tpu_custom_call.1} parent=0
    #allocation3 [shape = 'u8[2048]{0}', space=vmem, size = 0x800, scoped, tag = 'input window, operand 0']
    #allocation4 [shape = 's32[2]{0}', space=sflag, size = 0x8, scoped, tag = 'scoped memory for tpu_custom_call.1']
    #allocation5 [shape = 's32[2]{0}', space=sflag, size = 0x8, scoped, tag = 'scoped memory for tpu_custom_call.1']
    #allocation6 [shape = 'u8[16384]{0}', space=vmem, size = 0x4000, scoped, tag = 'input window, operand 1, single buffered']
    #allocation7 [shape = 's32[1]{0}', space=sflag, size = 0x4, scoped, tag = 'scoped memory for tpu_custom_call.1']
    #allocation8 [shape = 'u8[20480]{0}', space=vmem, size = 0x5000, scoped, tag = 'input window, operand 2, single buffered']
    #allocation9 [shape = 'u8[16384]{0}', space=vmem, size = 0x4000, scoped, tag = 'output window, operand 0']
    %8 = vsyncpa [#allocation4], 0
    %s9 = scalar_lea.sflag [#allocation4], 1
    %10 = vsyncpa %s9, 0
    %11 = vsyncpa [#allocation7], 0
    %12 = vsyncpa [#allocation5], 0
    %s13 = scalar_lea.sflag [#allocation5], 1
    %14 = vsyncpa %s13, 0
    loop: start=0, step=1, limit=4
    $region2: #{tpu_custom_call.1} parent=1 // loop_pre_header
      _
    $region3: #{tpu_custom_call.1} parent=1 // loop_header
      %s16 = sphi 0, %s20
      %p17 = scmp.ge.s32.totalorder %s16, 4
      %s26 = sphi 0, %s28
      %s29 = sphi 0, %s26
      %s30 = sphi 0, %s29
      %s46 = sphi 0, %s30
      %s50 = sphi 0, %s50
      %s52 = sphi 0, %s50
      %s53 = sphi 0, %s52
      %s67 = sphi 0, %s53
      %s71 = sphi 0, %s71
      %s73 = sphi 0, %s71
      %s74 = sphi 0, %s73
      %s88 = sphi 0, %s74
      %s94 = sphi 0, %s96
      %s97 = sphi 0, %s94
      %s98 = sphi 0, %s97
      %s114 = sphi 0, %s98
    $region4: #{tpu_custom_call.1} parent=1 // loop_header_branch
      %19 = sbr.rel (%p17) target = $region8
    $region5: #{tpu_custom_call.1} parent=1 // loop_body
      %s21 = ssub.s32 %s16, 1
      %s22 = ssub.s32 %s16, 2
      %s23 = sadd.s32 %s16, 1
      %s24 = ssub.s32 %s16, %s23
      %p25 = scmp.eq.s32.totalorder %s24, 0
      %s27 = sadd.s32 %s26, 1
      %s28 = scalar_select %p25, %s26, %s27
      %p31 = pneg %p25
      %p32 = scmp.eq.s32.totalorder %s16, 1
      %p33 = por %p31, %p32
      %p34 = scmp.ne.s32.totalorder %s26, %s29
      %p35 = scmp.eq.s32.totalorder %s16, 0
      %p36 = por %p34, %p35
      %p37 = scmp.ne.s32.totalorder %s26, %s29
      %p38 = scmp.eq.s32.totalorder %s21, 1
      %p39 = por %p37, %p38
      %p40 = scmp.ne.s32.totalorder %s29, %s30
      %p41 = scmp.eq.s32.totalorder %s21, 0
      %p42 = por %p40, %p41
      %p43 = scmp.ne.s32.totalorder %s29, %s30
      %p44 = scmp.eq.s32.totalorder %s22, 1
      %p45 = por %p43, %p44
      %p47 = scmp.ne.s32.totalorder %s30, %s46
      %p48 = scmp.eq.s32.totalorder %s22, 0
      %p49 = por %p47, %p48
      %s51 = sadd.s32 %s50, 1
      %p54 = scmp.eq.s32.totalorder %s16, 1
      %p55 = scmp.ne.s32.totalorder %s50, %s52
      %p56 = scmp.eq.s32.totalorder %s16, 0
      %p57 = por %p55, %p56
      %p58 = scmp.ne.s32.totalorder %s50, %s52
      %p59 = scmp.eq.s32.totalorder %s21, 1
      %p60 = por %p58, %p59
      %p61 = scmp.ne.s32.totalorder %s52, %s53
      %p62 = scmp.eq.s32.totalorder %s21, 0
      %p63 = por %p61, %p62
      %p64 = scmp.ne.s32.totalorder %s52, %s53
      %p65 = scmp.eq.s32.totalorder %s22, 1
      %p66 = por %p64, %p65
      %p68 = scmp.ne.s32.totalorder %s53, %s67
      %p69 = scmp.eq.s32.totalorder %s22, 0
      %p70 = por %p68, %p69
      %s72 = sadd.s32 %s71, 1
      %p75 = scmp.eq.s32.totalorder %s16, 1
      %p76 = scmp.ne.s32.totalorder %s71, %s73
      %p77 = scmp.eq.s32.totalorder %s16, 0
      %p78 = por %p76, %p77
      %p79 = scmp.ne.s32.totalorder %s71, %s73
      %p80 = scmp.eq.s32.totalorder %s21, 1
      %p81 = por %p79, %p80
      %p82 = scmp.ne.s32.totalorder %s73, %s74
      %p83 = scmp.eq.s32.totalorder %s21, 0
      %p84 = por %p82, %p83
      %p85 = scmp.ne.s32.totalorder %s73, %s74
      %p86 = scmp.eq.s32.totalorder %s22, 1
      %p87 = por %p85, %p86
      %p89 = scmp.ne.s32.totalorder %s74, %s88
      %p90 = scmp.eq.s32.totalorder %s22, 0
      %p91 = por %p89, %p90
      %s92 = ssub.s32 %s16, %s23
      %p93 = scmp.eq.s32.totalorder %s92, 0
      %s95 = sadd.s32 %s94, 1
      %s96 = scalar_select %p93, %s94, %s95
      %p99 = pneg %p93
      %p100 = scmp.eq.s32.totalorder %s16, 1
      %p101 = por %p99, %p100
      %p102 = scmp.ne.s32.totalorder %s94, %s97
      %p103 = scmp.eq.s32.totalorder %s16, 0
      %p104 = por %p102, %p103
      %p105 = scmp.ne.s32.totalorder %s94, %s97
      %p106 = scmp.eq.s32.totalorder %s21, 1
      %p107 = por %p105, %p106
      %p108 = scmp.ne.s32.totalorder %s97, %s98
      %p109 = scmp.eq.s32.totalorder %s21, 0
      %p110 = por %p108, %p109
      %p111 = scmp.ne.s32.totalorder %s97, %s98
      %p112 = scmp.eq.s32.totalorder %s22, 1
      %p113 = por %p111, %p112
      %p115 = scmp.ne.s32.totalorder %s98, %s114
      %p116 = scmp.eq.s32.totalorder %s22, 0
      %p117 = por %p115, %p116
      %p118 = scmp.le.s32.totalorder 1, %s16
      %p119 = scmp.lt.s32.totalorder %s16, 3
      %p120 = pnand %p118, %p119
      %p121 = pneg %p120
      // Predicated region
      $region9: #{tpu_custom_call.1} parent=5 // pred_check
        _
      $region10: #{tpu_custom_call.1} parent=5 // pred_check_branch
        %123 = sbr.rel (%p120) target = $region12
      $region11: #{tpu_custom_call.1} parent=5 // pred_region
        %s124 = ssub.s32 %s16, 1
        // Predicated region
        $region13: #{tpu_custom_call.1} parent=11 // pred_check
          %p125 = pneg %p63
        $region14: #{tpu_custom_call.1} parent=11 // pred_check_branch
          %127 = sbr.rel (%p125) target = $region16
        $region15: #{tpu_custom_call.1} parent=11 // pred_region
          %s129 = ssub.s32 512, 512
          %130 = vsyncadd [#allocation7], %s129
          %s131 = sshll.u32 [#allocation6], 4
          %s132 = int_to_ptr.vmem [resolvable:$true] %s131
          %137 = dma.hbm_to_vmem [thread:$0]  %s1, 512, %s132, [#allocation7], 256, 256, 16
        $region16: #{tpu_custom_call.1} parent=11 // pred_fallthru
          _
        // Predicated region
        $region17: #{tpu_custom_call.1} parent=11 // pred_check
          %p138 = pneg %p84
        $region18: #{tpu_custom_call.1} parent=11 // pred_check_branch
          %140 = sbr.rel (%p138) target = $region20
        $region19: #{tpu_custom_call.1} parent=11 // pred_region
          %s142 = ssub.s32 640, 640
          %143 = vsyncadd [#allocation7], %s142
          %s145 = sshll.u32 [#allocation8], 4
          %s146 = int_to_ptr.vmem [resolvable:$true] %s145
          %148 = dma.hbm_to_vmem [thread:$0]  %s2, 640, %s146, [#allocation7]
        $region20: #{tpu_custom_call.1} parent=11 // pred_fallthru
          _
      $region12: #{tpu_custom_call.1} parent=5 // pred_fallthru
        _
      %p149 = scmp.lt.s32.totalorder %s16, 2
      // Predicated region
      $region21: #{tpu_custom_call.1} parent=5 // pred_check
        %p150 = pneg %p149
      $region22: #{tpu_custom_call.1} parent=5 // pred_check_branch
        %152 = sbr.rel (%p150) target = $region24
      $region23: #{tpu_custom_call.1} parent=5 // pred_region
        // Predicated region
        $region25: #{tpu_custom_call.1} parent=23 // pred_check
          %p153 = pneg %p36
        $region26: #{tpu_custom_call.1} parent=23 // pred_check_branch
          %155 = sbr.rel (%p153) target = $region28
        $region27: #{tpu_custom_call.1} parent=23 // pred_region
          %s156 = sand.u32 %s26, 1
          %s157 = scalar_lea.sflag [#allocation4], %s156
          %s158 = sand.u32 %s26, 1
          %s159 = smul.addr %s158, 2
          %s160 = scalar_lea.vmem [#allocation3], %s159
          %s162 = ssub.s32 32, 32
          %163 = vsyncadd %s157, %s162
          %s164 = smul.addr %s16, 2
          %s165 = smul.addr %s164, 16
          %s166 = scalar_lea.hbm %s0, %s165
          %s168 = sshll.u32 %s160, 4
          %s169 = int_to_ptr.vmem [resolvable:$true] %s168
          %171 = dma.hbm_to_vmem [thread:$0]  %s166, 32, %s169, %s157
        $region28: #{tpu_custom_call.1} parent=23 // pred_fallthru
          _
      $region24: #{tpu_custom_call.1} parent=5 // pred_fallthru
        _
      %p172 = scmp.le.s32.totalorder 1, %s16
      %p173 = scmp.lt.s32.totalorder %s16, 3
      %p174 = pnand %p172, %p173
      %p175 = pneg %p174
      // Predicated region
      $region29: #{tpu_custom_call.1} parent=5 // pred_check
        _
      $region30: #{tpu_custom_call.1} parent=5 // pred_check_branch
        %177 = sbr.rel (%p174) target = $region32
      $region31: #{tpu_custom_call.1} parent=5 // pred_region
        %s178 = ssub.s32 %s16, 1
        %s179 = sand.u32 %s29, 1
        %s180 = scalar_lea.sflag [#allocation4], %s179
        %s181 = sand.u32 %s29, 1
        %s182 = smul.addr %s181, 2
        %s183 = scalar_lea.vmem [#allocation3], %s182
        // Predicated region
        $region33: #{tpu_custom_call.1} parent=31 // pred_check
          %p184 = pneg %p42
        $region34: #{tpu_custom_call.1} parent=31 // pred_check_branch
          %186 = sbr.rel (%p184) target = $region36
        $region35: #{tpu_custom_call.1} parent=31 // pred_region
          %187 = dma.done %s180, 32
        $region36: #{tpu_custom_call.1} parent=31 // pred_fallthru
          _
        // Predicated region
        $region37: #{tpu_custom_call.1} parent=31 // pred_check
          %p188 = pneg %p63
        $region38: #{tpu_custom_call.1} parent=31 // pred_check_branch
          %190 = sbr.rel (%p188) target = $region40
        $region39: #{tpu_custom_call.1} parent=31 // pred_region
          %191 = dma.done [#allocation7], 512
        $region40: #{tpu_custom_call.1} parent=31 // pred_fallthru
          _
        // Predicated region
        $region41: #{tpu_custom_call.1} parent=31 // pred_check
          %p192 = pneg %p84
        $region42: #{tpu_custom_call.1} parent=31 // pred_check_branch
          %194 = sbr.rel (%p192) target = $region44
        $region43: #{tpu_custom_call.1} parent=31 // pred_region
          %195 = dma.done [#allocation7], 640
        $region44: #{tpu_custom_call.1} parent=31 // pred_fallthru
          _
        %s196 = sand.u32 %s29, 1
        %s197 = scalar_lea.sflag [#allocation4], %s196
        %s198 = sand.u32 %s29, 1
        %s199 = smul.addr %s198, 2
        %s200 = scalar_lea.vmem [#allocation3], %s199
        %p201 = pneg %p42
        %p202 = pneg %p39
        %p203 = pneg %p63
        %p204 = pneg %p60
        %p205 = pneg %p84
        %p206 = pneg %p81
        %p207 = pneg %p110
        %p208 = pneg %p107
        %s209 = sand.u32 %s97, 1
        %s210 = scalar_lea.sflag [#allocation5], %s209
        %s211 = sand.u32 %s97, 1
        %s212 = smul.addr %s211, 16
        %s213 = scalar_lea.vmem [#allocation9], %s212
        %214 = vst [vmem:[#allocation2] sm:$0xff] 0.0
        %215 = vst [vmem:[#allocation2 + $0x8] sm:$0xff] 0.0
        %216 = vst [vmem:[#allocation2 + $0x30] sm:$0x3] 0.0
        %217 = vst [vmem:[#allocation2 + $0x38] sm:$0x3] 0.0
        %218 = vst [vmem:[#allocation2 + $0x20] sm:$0xff] 0.0
        %219 = vst [vmem:[#allocation2 + $0x28] sm:$0xff] 0.0
        %220 = vst [vmem:[#allocation2 + $0x50] sm:$0x3] 0.0
        %221 = vst [vmem:[#allocation2 + $0x58] sm:$0x3] 0.0
        %v222 = vld [vmem:[#allocation8 + $0x20] sm:$0xff]
        %v223 = vld [vmem:[#allocation8 + $0x18] sm:$0xff]
        %v224 = vld [vmem:[%s183] sm:$0x3]
        %v225 = vmax.f32 %v224, 0.0
        %v227 = vlaneseq
        %v228 = vshrl.u32 %v227, 7
        %v229 = vsub.s32 0, %v228
        %v230 = vrot.slane %v225, %v229
        %v231 = vlaneseq
        %v232 = vshrl.u32 %v231, 7
        %v233 = vsub.s32 1, %v232
        %v234 = vrot.slane %v225, %v233
        %v238 = vlaneseq
        %v239 = vshrl.u32 %v238, 7
        %v240 = vsub.s32 0, %v239
        %v241 = vrot.slane %v224, %v240
        %v242 = vlaneseq
        %v243 = vshrl.u32 %v242, 7
        %v244 = vsub.s32 1, %v243
        %v245 = vrot.slane %v224, %v244
        %vm248 = vcmask 1040384
        %v249 = vsel %vm248, %v230, %v241
        %v250 = vsel %vm248, %v234, %v245
        %251 = vst [vmem:[#allocation2 + $0x40] sm:$0x3] %v249
        %252 = vst [vmem:[#allocation2 + $0x48] sm:$0x3] %v250
        %254 = vset.pattern.permute.xlu0 9
        %255 = vperm.xlu0 %254, %v222
        %v256 = vpop.permute.xlu0 %255
        %v258 = vmul.f32 %v256, %v241
        %v259 = vmul.f32 %v256, %v245
        %260 = vset.pattern.permute.xlu0 10
        %261 = vperm.xlu0 %260, %v222
        %v262 = vpop.permute.xlu0 %261
        %v264 = vadd.f32 %v258, %v262
        %v265 = vadd.f32 %v259, %v262
        %s266 = scalar_lea.vmem [#allocation2], 57
        %v267 = vld [vmem:[%s266] ss:$8 sm:$0x7]
        %v268 = vld [vmem:[#allocation6] ss:$8 sm:$0x3]
        %270 = vrot.lane.b32.xlu0 %v268, 111
        %v271 = vpop.permute.xlu0 %270
        %v272 = vrot.slane %v271, 7
        %vm273 = vcmask 908288
        %v274 = vsel %vm273, %v272, %v271
        %v276 = vmul.f32 %v267, %v274
        %s277 = scalar_lea.vmem [#allocation6], 2
        %v278 = vld [vmem:[%s277] ss:$8 sm:$0x3]
        %280 = vrot.lane.b32.xlu0 %v278, 113
        %v281 = vpop.permute.xlu0 %280
        %v282 = vrot.slane %v281, 7
        %vm283 = vcmask 924672
        %v284 = vsel %vm283, %v282, %v281
        %v286 = vmul.f32 %v267, %v284
        %v288 = vlaneseq
        %v289 = vshrl.u32 %v288, 7
        %v290 = vsub.s32 0, %v289
        %v291 = vrot.slane %v276, %v290
        %v292 = vlaneseq
        %v293 = vshrl.u32 %v292, 7
        %v294 = vsub.s32 1, %v293
        %v295 = vrot.slane %v276, %v294
        %v296 = vlaneseq
        %v297 = vshrl.u32 %v296, 7
        %v298 = vsub.s32 2, %v297
        %v299 = vrot.slane %v276, %v298
        %v304 = vlaneseq
        %v305 = vshrl.u32 %v304, 7
        %v306 = vsub.s32 0, %v305
        %v307 = vrot.slane %v267, %v306
        %v308 = vlaneseq
        %v309 = vshrl.u32 %v308, 7
        %v310 = vsub.s32 1, %v309
        %v311 = vrot.slane %v267, %v310
        %v312 = vlaneseq
        %v313 = vshrl.u32 %v312, 7
        %v314 = vsub.s32 2, %v313
        %v315 = vrot.slane %v267, %v314
        %316 = vrot.lane.b32.xlu0 %v307, 127
        %v317 = vpop.permute.xlu0 %316
        %318 = vrot.lane.b32.xlu0 %v311, 127
        %v319 = vpop.permute.xlu0 %318
        %320 = vrot.lane.b32.xlu0 %v315, 127
        %v321 = vpop.permute.xlu0 %320
        %vm322 = vcmask 1039360
        %v323 = vsel %vm322, %v317, %v319
        %v324 = vsel %vm322, %v319, %v321
        %v329 = vlaneseq
        %v330 = vshrl.u32 %v329, 7
        %v331 = vsub.s32 0, %v330
        %v332 = vrot.slane %v286, %v331
        %v333 = vlaneseq
        %v334 = vshrl.u32 %v333, 7
        %v335 = vsub.s32 1, %v334
        %v336 = vrot.slane %v286, %v335
        %v337 = vlaneseq
        %v338 = vshrl.u32 %v337, 7
        %v339 = vsub.s32 2, %v338
        %v340 = vrot.slane %v286, %v339
        %341 = vrot.lane.b32.xlu0 %v332, 126
        %v342 = vpop.permute.xlu0 %341
        %343 = vrot.lane.b32.xlu0 %v336, 126
        %v344 = vpop.permute.xlu0 %343
        %345 = vrot.lane.b32.xlu0 %v340, 126
        %v346 = vpop.permute.xlu0 %345
        %vm347 = vcmask 1031168
        %v348 = vsel %vm347, %v342, %v344
        %v349 = vsel %vm347, %v344, %v346
        %v353 = vsel %vm248, %v291, %v323
        %v354 = vsel %vm248, %v295, %v324
        %v355 = vsel %vm248, %v299, %v321
        %vm356 = vcmask 1041408
        %v357 = vsel %vm356, %v353, %v348
        %v358 = vsel %vm356, %v354, %v349
        %v359 = vsel %vm356, %v355, %v346
        %v360 = vld [vmem:[#allocation8 + $0x20] sm:$0xff]
        %361 = vrot.lane.b32.xlu0 %v268, 127
        %v362 = vpop.permute.xlu0 %361
        %v363 = vrot.slane %v362, 7
        %v364 = vsel %vm322, %v363, %v362
        %v366 = vmul.f32 %v267, %v364
        %s367 = scalar_lea.vmem [#allocation2], 65
        %v368 = vld [vmem:[%s367] ss:$8 sm:$0x3]
        %v369 = vld [vmem:[%s367] ss:$8 sm:$0x7]
        %370 = vrot.lane.b32.xlu0 %v278, 1
        %v371 = vpop.permute.xlu0 %370
        %v372 = vrot.slane %v371, 7
        %vm373 = vcmask 7168
        %v374 = vsel %vm373, %v372, %v371
        %v376 = vmul.f32 %v369, %v374
        %v378 = vlaneseq
        %v379 = vshrl.u32 %v378, 7
        %v380 = vsub.s32 0, %v379
        %v381 = vrot.slane %v366, %v380
        %v382 = vlaneseq
        %v383 = vshrl.u32 %v382, 7
        %v384 = vsub.s32 1, %v383
        %v385 = vrot.slane %v366, %v384
        %v386 = vlaneseq
        %v387 = vshrl.u32 %v386, 7
        %v388 = vsub.s32 2, %v387
        %v389 = vrot.slane %v366, %v388
        %v394 = vlaneseq
        %v395 = vshrl.u32 %v394, 7
        %v396 = vsub.s32 0, %v395
        %v397 = vrot.slane %v368, %v396
        %v398 = vlaneseq
        %v399 = vshrl.u32 %v398, 7
        %v400 = vsub.s32 1, %v399
        %v401 = vrot.slane %v368, %v400
        %402 = vrot.lane.b32.xlu0 %v397, 127
        %v403 = vpop.permute.xlu0 %402
        %404 = vrot.lane.b32.xlu0 %v401, 127
        %v405 = vpop.permute.xlu0 %404
        %v406 = vsel %vm322, %v403, %v405
        %v411 = vlaneseq
        %v412 = vshrl.u32 %v411, 7
        %v413 = vsub.s32 0, %v412
        %v414 = vrot.slane %v376, %v413
        %v415 = vlaneseq
        %v416 = vshrl.u32 %v415, 7
        %v417 = vsub.s32 1, %v416
        %v418 = vrot.slane %v376, %v417
        %v419 = vlaneseq
        %v420 = vshrl.u32 %v419, 7
        %v421 = vsub.s32 2, %v420
        %v422 = vrot.slane %v376, %v421
        %423 = vrot.lane.b32.xlu0 %v414, 126
        %v424 = vpop.permute.xlu0 %423
        %425 = vrot.lane.b32.xlu0 %v418, 126
        %v426 = vpop.permute.xlu0 %425
        %427 = vrot.lane.b32.xlu0 %v422, 126
        %v428 = vpop.permute.xlu0 %427
        %v429 = vsel %vm347, %v424, %v426
        %v430 = vsel %vm347, %v426, %v428
        %v434 = vsel %vm248, %v381, %v403
        %v435 = vsel %vm248, %v385, %v406
        %v436 = vsel %vm248, %v389, %v405
        %v437 = vsel %vm356, %v434, %v424
        %v438 = vsel %vm356, %v435, %v429
        %v439 = vsel %vm356, %v436, %v430
        %441 = vrot.lane.b32.xlu0 %v360, 125
        %v442 = vpop.permute.xlu0 %441
        %446 = vrot.lane.b32.xlu0 %v437, 1
        %v447 = vpop.permute.xlu0 %446
        %448 = vrot.lane.b32.xlu0 %v438, 1
        %v449 = vpop.permute.xlu0 %448
        %450 = vrot.lane.b32.xlu0 %v439, 1
        %v451 = vpop.permute.xlu0 %450
        %v452 = vsel %vm373, %v447, %v449
        %v453 = vsel %vm373, %v449, %v451
        %vm454 = vcmask 23552
        %v455 = vsel %vm454, %v442, 0
        %vm457 = vcmask 1042432
        %v458 = vsel %vm457, %v452, 0
        %v460 = vsel %vm457, %v453, 0
        %462 = vmatprep.subr.mxu0 %v460
        %463 = vmatpush1.msra.mxu0 %v458
        %464 = vmatprep.subr.mxu0 0.0
        %465 = vmatpush1.msra.mxu0 0.0
        %466 = vmatprep.subr.mxu0 0.0
        %467 = vmatpush1.msra.mxu0 0.0
        %468 = vmatprep.subr.mxu0 0.0
        %469 = vmatpush1.msra.mxu0 0.0
        %470 = vmatprep.subr.mxu0 0.0
        %471 = vmatpush1.msra.mxu0 0.0
        %472 = vmatprep.subr.mxu0 0.0
        %473 = vmatpush1.msra.mxu0 0.0
        %474 = vmatprep.subr.mxu0 0.0
        %475 = vmatpush1.msra.mxu0 0.0
        %476 = vmatprep.subr.mxu0 0.0
        %477 = vmatpush1.msra.mxu0 0.0
        %478 = vmatprep.subr.mxu0 0.0
        %479 = vmatpush1.msra.mxu0 0.0
        %480 = vmatprep.subr.mxu0 0.0
        %481 = vmatpush1.msra.mxu0 0.0
        %482 = vmatprep.subr.mxu0 0.0
        %483 = vmatpush1.msra.mxu0 0.0
        %484 = vmatprep.subr.mxu0 0.0
        %485 = vmatpush1.msra.mxu0 0.0
        %486 = vmatprep.subr.mxu0 0.0
        %487 = vmatpush1.msra.mxu0 0.0
        %488 = vmatprep.subr.mxu0 0.0
        %489 = vmatpush1.msra.mxu0 0.0
        %490 = vmatprep.subr.mxu0 0.0
        %491 = vmatpush1.msra.mxu0 0.0
        %492 = vmatprep.subr.mxu0 0.0
        %493 = vmatpush1.msra.mxu0 0.0
        %494 = vmatprep.subr.mxu0 0.0
        %495 = vmatpush1.msra.mxu0 0.0
        %496 = vmatprep.subr.mxu0 0.0
        %497 = vmatpush1.msra.mxu0 0.0
        %498 = vmatprep.subr.mxu0 0.0
        %499 = vmatpush1.msra.mxu0 0.0
        %500 = vmatprep.subr.mxu0 0.0
        %501 = vmatpush1.msra.mxu0 0.0
        %502 = vmatprep.subr.mxu0 0.0
        %503 = vmatpush1.msra.mxu0 0.0
        %504 = vmatprep.subr.mxu0 0.0
        %505 = vmatpush1.msra.mxu0 0.0
        %506 = vmatprep.subr.mxu0 0.0
        %507 = vmatpush1.msra.mxu0 0.0
        %508 = vmatprep.subr.mxu0 0.0
        %509 = vmatpush1.msra.mxu0 0.0
        %510 = vmatprep.subr.mxu0 0.0
        %511 = vmatpush1.msra.mxu0 0.0
        %512 = vmatprep.subr.mxu0 0.0
        %513 = vmatpush1.msra.mxu0 0.0
        %514 = vmatprep.subr.mxu0 0.0
        %515 = vmatpush1.msra.mxu0 0.0
        %516 = vmatprep.subr.mxu0 0.0
        %517 = vmatpush1.msra.mxu0 0.0
        %518 = vmatprep.subr.mxu0 0.0
        %519 = vmatpush1.msra.mxu0 0.0
        %520 = vmatprep.subr.mxu0 0.0
        %521 = vmatpush1.msra.mxu0 0.0
        %522 = vmatprep.subr.mxu0 0.0
        %523 = vmatpush1.msra.mxu0 0.0
        %524 = vmatprep.subr.mxu0 0.0
        %525 = vmatpush1.msra.mxu0 0.0
        %526 = vmatprep.mubr.f32.mxu0 0.0
        %527 = vmatmul.mubr.f32.gmra.mrb[0].mxu0 %v455
        %v528 = vpop.f32.mrb[0].mxu0
        %v529 = vadd.f32 0.0, %v528
        %v530 = vpop.f32.mrb[0].mxu0
        %v531 = vadd.f32 0.0, %v530
        %532 = vdwg.mxu0
        %536 = vrot.lane.b32.xlu0 %v357, 17
        %v537 = vpop.permute.xlu0 %536
        %538 = vrot.lane.b32.xlu0 %v358, 17
        %v539 = vpop.permute.xlu0 %538
        %540 = vrot.lane.b32.xlu0 %v359, 17
        %v541 = vpop.permute.xlu0 %540
        %vm542 = vcmask 138240
        %v543 = vsel %vm542, %v537, %v539
        %v544 = vsel %vm542, %v539, %v541
        %v545 = vsel %vm454, %v360, 0
        %v547 = vsel %vm457, %v543, 0
        %v549 = vsel %vm457, %v544, 0
        %551 = vmatprep.subr.mxu0 %v549
        %552 = vmatpush1.msra.mxu0 %v547
        %553 = vmatprep.subr.mxu0 0.0
        %554 = vmatpush1.msra.mxu0 0.0
        %555 = vmatprep.subr.mxu0 0.0
        %556 = vmatpush1.msra.mxu0 0.0
        %557 = vmatprep.subr.mxu0 0.0
        %558 = vmatpush1.msra.mxu0 0.0
        %559 = vmatprep.subr.mxu0 0.0
        %560 = vmatpush1.msra.mxu0 0.0
        %561 = vmatprep.subr.mxu0 0.0
        %562 = vmatpush1.msra.mxu0 0.0
        %563 = vmatprep.subr.mxu0 0.0
        %564 = vmatpush1.msra.mxu0 0.0
        %565 = vmatprep.subr.mxu0 0.0
        %566 = vmatpush1.msra.mxu0 0.0
        %567 = vmatprep.subr.mxu0 0.0
        %568 = vmatpush1.msra.mxu0 0.0
        %569 = vmatprep.subr.mxu0 0.0
        %570 = vmatpush1.msra.mxu0 0.0
        %571 = vmatprep.subr.mxu0 0.0
        %572 = vmatpush1.msra.mxu0 0.0
        %573 = vmatprep.subr.mxu0 0.0
        %574 = vmatpush1.msra.mxu0 0.0
        %575 = vmatprep.subr.mxu0 0.0
        %576 = vmatpush1.msra.mxu0 0.0
        %577 = vmatprep.subr.mxu0 0.0
        %578 = vmatpush1.msra.mxu0 0.0
        %579 = vmatprep.subr.mxu0 0.0
        %580 = vmatpush1.msra.mxu0 0.0
        %581 = vmatprep.subr.mxu0 0.0
        %582 = vmatpush1.msra.mxu0 0.0
        %583 = vmatprep.subr.mxu0 0.0
        %584 = vmatpush1.msra.mxu0 0.0
        %585 = vmatprep.subr.mxu0 0.0
        %586 = vmatpush1.msra.mxu0 0.0
        %587 = vmatprep.subr.mxu0 0.0
        %588 = vmatpush1.msra.mxu0 0.0
        %589 = vmatprep.subr.mxu0 0.0
        %590 = vmatpush1.msra.mxu0 0.0
        %591 = vmatprep.subr.mxu0 0.0
        %592 = vmatpush1.msra.mxu0 0.0
        %593 = vmatprep.subr.mxu0 0.0
        %594 = vmatpush1.msra.mxu0 0.0
        %595 = vmatprep.subr.mxu0 0.0
        %596 = vmatpush1.msra.mxu0 0.0
        %597 = vmatprep.subr.mxu0 0.0
        %598 = vmatpush1.msra.mxu0 0.0
        %599 = vmatprep.subr.mxu0 0.0
        %600 = vmatpush1.msra.mxu0 0.0
        %601 = vmatprep.subr.mxu0 0.0
        %602 = vmatpush1.msra.mxu0 0.0
        %603 = vmatprep.subr.mxu0 0.0
        %604 = vmatpush1.msra.mxu0 0.0
        %605 = vmatprep.subr.mxu0 0.0
        %606 = vmatpush1.msra.mxu0 0.0
        %607 = vmatprep.subr.mxu0 0.0
        %608 = vmatpush1.msra.mxu0 0.0
        %609 = vmatprep.subr.mxu0 0.0
        %610 = vmatpush1.msra.mxu0 0.0
        %611 = vmatprep.subr.mxu0 0.0
        %612 = vmatpush1.msra.mxu0 0.0
        %613 = vmatprep.subr.mxu0 0.0
        %614 = vmatpush1.msra.mxu0 0.0
        %615 = vmatprep.mubr.f32.mxu0 0.0
        %616 = vmatmul.mubr.f32.gmra.mrb[0].mxu0 %v545
        %v617 = vpop.f32.mrb[0].mxu0
        %v618 = vadd.f32 %v529, %v617
        %v619 = vpop.f32.mrb[0].mxu0
        %v620 = vadd.f32 %v531, %v619
        %621 = vdwg.mxu0
        %622 = vrot.lane.b32.xlu0 %v268, 15
        %v623 = vpop.permute.xlu0 %622
        %v624 = vrot.slane %v623, 7
        %vm625 = vcmask 121856
        %v626 = vsel %vm625, %v624, %v623
        %v628 = vmul.f32 %v369, %v626
        %629 = vrot.lane.b32.xlu0 %v278, 17
        %v630 = vpop.permute.xlu0 %629
        %v631 = vrot.slane %v630, 7
        %v632 = vsel %vm542, %v631, %v630
        %v634 = vmul.f32 %v369, %v632
        %v636 = vlaneseq
        %v637 = vshrl.u32 %v636, 7
        %v638 = vsub.s32 0, %v637
        %v639 = vrot.slane %v628, %v638
        %v640 = vlaneseq
        %v641 = vshrl.u32 %v640, 7
        %v642 = vsub.s32 1, %v641
        %v643 = vrot.slane %v628, %v642
        %v644 = vlaneseq
        %v645 = vshrl.u32 %v644, 7
        %v646 = vsub.s32 2, %v645
        %v647 = vrot.slane %v628, %v646
        %v652 = vlaneseq
        %v653 = vshrl.u32 %v652, 7
        %v654 = vsub.s32 0, %v653
        %v655 = vrot.slane %v369, %v654
        %v656 = vlaneseq
        %v657 = vshrl.u32 %v656, 7
        %v658 = vsub.s32 1, %v657
        %v659 = vrot.slane %v369, %v658
        %v660 = vlaneseq
        %v661 = vshrl.u32 %v660, 7
        %v662 = vsub.s32 2, %v661
        %v663 = vrot.slane %v369, %v662
        %664 = vrot.lane.b32.xlu0 %v655, 127
        %v665 = vpop.permute.xlu0 %664
        %666 = vrot.lane.b32.xlu0 %v659, 127
        %v667 = vpop.permute.xlu0 %666
        %668 = vrot.lane.b32.xlu0 %v663, 127
        %v669 = vpop.permute.xlu0 %668
        %v670 = vsel %vm322, %v665, %v667
        %v671 = vsel %vm322, %v667, %v669
        %v676 = vlaneseq
        %v677 = vshrl.u32 %v676, 7
        %v678 = vsub.s32 0, %v677
        %v679 = vrot.slane %v634, %v678
        %v680 = vlaneseq
        %v681 = vshrl.u32 %v680, 7
        %v682 = vsub.s32 1, %v681
        %v683 = vrot.slane %v634, %v682
        %v684 = vlaneseq
        %v685 = vshrl.u32 %v684, 7
        %v686 = vsub.s32 2, %v685
        %v687 = vrot.slane %v634, %v686
        %688 = vrot.lane.b32.xlu0 %v679, 126
        %v689 = vpop.permute.xlu0 %688
        %690 = vrot.lane.b32.xlu0 %v683, 126
        %v691 = vpop.permute.xlu0 %690
        %692 = vrot.lane.b32.xlu0 %v687, 126
        %v693 = vpop.permute.xlu0 %692
        %v694 = vsel %vm347, %v689, %v691
        %v695 = vsel %vm347, %v691, %v693
        %v699 = vsel %vm248, %v639, %v670
        %v700 = vsel %vm248, %v643, %v671
        %v701 = vsel %vm248, %v647, %v669
        %v702 = vsel %vm356, %v699, %v694
        %v703 = vsel %vm356, %v700, %v695
        %v704 = vsel %vm356, %v701, %v693
        %705 = vrot.lane.b32.xlu0 %v360, 122
        %v706 = vpop.permute.xlu0 %705
        %710 = vrot.lane.b32.xlu0 %v702, 113
        %v711 = vpop.permute.xlu0 %710
        %712 = vrot.lane.b32.xlu0 %v703, 113
        %v713 = vpop.permute.xlu0 %712
        %714 = vrot.lane.b32.xlu0 %v704, 113
        %v715 = vpop.permute.xlu0 %714
        %v716 = vsel %vm283, %v711, %v713
        %v717 = vsel %vm283, %v713, %v715
        %v718 = vsel %vm454, %v706, 0
        %v720 = vsel %vm457, %v716, 0
        %v722 = vsel %vm457, %v717, 0
        %724 = vmatprep.subr.mxu0 %v722
        %725 = vmatpush1.msra.mxu0 %v720
        %726 = vmatprep.subr.mxu0 0.0
        %727 = vmatpush1.msra.mxu0 0.0
        %728 = vmatprep.subr.mxu0 0.0
        %729 = vmatpush1.msra.mxu0 0.0
        %730 = vmatprep.subr.mxu0 0.0
        %731 = vmatpush1.msra.mxu0 0.0
        %732 = vmatprep.subr.mxu0 0.0
        %733 = vmatpush1.msra.mxu0 0.0
        %734 = vmatprep.subr.mxu0 0.0
        %735 = vmatpush1.msra.mxu0 0.0
        %736 = vmatprep.subr.mxu0 0.0
        %737 = vmatpush1.msra.mxu0 0.0
        %738 = vmatprep.subr.mxu0 0.0
        %739 = vmatpush1.msra.mxu0 0.0
        %740 = vmatprep.subr.mxu0 0.0
        %741 = vmatpush1.msra.mxu0 0.0
        %742 = vmatprep.subr.mxu0 0.0
        %743 = vmatpush1.msra.mxu0 0.0
        %744 = vmatprep.subr.mxu0 0.0
        %745 = vmatpush1.msra.mxu0 0.0
        %746 = vmatprep.subr.mxu0 0.0
        %747 = vmatpush1.msra.mxu0 0.0
        %748 = vmatprep.subr.mxu0 0.0
        %749 = vmatpush1.msra.mxu0 0.0
        %750 = vmatprep.subr.mxu0 0.0
        %751 = vmatpush1.msra.mxu0 0.0
        %752 = vmatprep.subr.mxu0 0.0
        %753 = vmatpush1.msra.mxu0 0.0
        %754 = vmatprep.subr.mxu0 0.0
        %755 = vmatpush1.msra.mxu0 0.0
        %756 = vmatprep.subr.mxu0 0.0
        %757 = vmatpush1.msra.mxu0 0.0
        %758 = vmatprep.subr.mxu0 0.0
        %759 = vmatpush1.msra.mxu0 0.0
        %760 = vmatprep.subr.mxu0 0.0
        %761 = vmatpush1.msra.mxu0 0.0
        %762 = vmatprep.subr.mxu0 0.0
        %763 = vmatpush1.msra.mxu0 0.0
        %764 = vmatprep.subr.mxu0 0.0
        %765 = vmatpush1.msra.mxu0 0.0
        %766 = vmatprep.subr.mxu0 0.0
        %767 = vmatpush1.msra.mxu0 0.0
        %768 = vmatprep.subr.mxu0 0.0
        %769 = vmatpush1.msra.mxu0 0.0
        %770 = vmatprep.subr.mxu0 0.0
        %771 = vmatpush1.msra.mxu0 0.0
        %772 = vmatprep.subr.mxu0 0.0
        %773 = vmatpush1.msra.mxu0 0.0
        %774 = vmatprep.subr.mxu0 0.0
        %775 = vmatpush1.msra.mxu0 0.0
        %776 = vmatprep.subr.mxu0 0.0
        %777 = vmatpush1.msra.mxu0 0.0
        %778 = vmatprep.subr.mxu0 0.0
        %779 = vmatpush1.msra.mxu0 0.0
        %780 = vmatprep.subr.mxu0 0.0
        %781 = vmatpush1.msra.mxu0 0.0
        %782 = vmatprep.subr.mxu0 0.0
        %783 = vmatpush1.msra.mxu0 0.0
        %784 = vmatprep.subr.mxu0 0.0
        %785 = vmatpush1.msra.mxu0 0.0
        %786 = vmatprep.subr.mxu0 0.0
        %787 = vmatpush1.msra.mxu0 0.0
        %788 = vmatprep.mubr.f32.mxu0 0.0
        %789 = vmatmul.mubr.f32.gmra.mrb[0].mxu0 %v718
        %v790 = vpop.f32.mrb[0].mxu0
        %v791 = vadd.f32 0.0, %v790
        %v792 = vpop.f32.mrb[0].mxu0
        %v793 = vadd.f32 0.0, %v792
        %794 = vdwg.mxu0
        %v795 = vadd.f32 %v618, %v791
        %v796 = vadd.f32 %v620, %v793
        %797 = vset.pattern.permute.xlu0 11
        %798 = vperm.xlu0 %797, %v222
        %v799 = vpop.permute.xlu0 %798
        %v801 = vadd.f32 %v795, %v799
        %v802 = vadd.f32 %v796, %v799
        %v803 = vmax.f32 %v801, 0.0
        %v804 = vmax.f32 %v802, 0.0
        %805 = vst [vmem:[#allocation2 + $0x10] sm:$0xff] %v803
        %806 = vst [vmem:[#allocation2 + $0x18] sm:$0xff] %v804
        %v807 = vld [vmem:[#allocation2 + $0x8] sm:$0xff]
        %v808 = vld [vmem:[#allocation2 + $0x10] sm:$0xff]
        %v809 = vld [vmem:[#allocation2 + $0x18] sm:$0xff]
        %v810 = vld [vmem:[#allocation2 + $0x38] sm:$0x1]
        %v811 = vld [vmem:[#allocation2 + $0x40] sm:$0x1]
        %v812 = vld [vmem:[#allocation2 + $0x48] sm:$0x1]
        %s813 = scalar_lea.vmem [#allocation6], 3
        %v814 = vld [vmem:[%s813] ss:$8 sm:$0x3]
        %v816 = vlaneseq
        %v817 = vshrl.u32 %v816, 7
        %v818 = vsub.s32 0, %v817
        %v819 = vrot.slane %v814, %v818
        %v820 = vlaneseq
        %v821 = vshrl.u32 %v820, 7
        %v822 = vsub.s32 1, %v821
        %v823 = vrot.slane %v814, %v822
        %824 = vrot.lane.b32.xlu0 %v819, 60
        %v825 = vpop.permute.xlu0 %824
        %826 = vrot.lane.b32.xlu0 %v823, 60
        %v827 = vpop.permute.xlu0 %826
        %vm828 = vcmask 490496
        %v829 = vsel %vm828, %v825, %v827
        %v833 = vmul.f32 %v807, %v825
        %v834 = vmul.f32 %v808, %v829
        %v835 = vmul.f32 %v809, %v827
        %v836 = vmul.f32 %v810, %v825
        %v837 = vmul.f32 %v811, %v829
        %v838 = vmul.f32 %v812, %v827
        %s839 = scalar_lea.vmem [#allocation6], 5
        %v840 = vld [vmem:[%s839] ss:$8 sm:$0x3]
        %v842 = vlaneseq
        %v843 = vshrl.u32 %v842, 7
        %v844 = vsub.s32 0, %v843
        %v845 = vrot.slane %v840, %v844
        %v846 = vlaneseq
        %v847 = vshrl.u32 %v846, 7
        %v848 = vsub.s32 1, %v847
        %v849 = vrot.slane %v840, %v848
        %850 = vrot.lane.b32.xlu0 %v845, 68
        %v851 = vpop.permute.xlu0 %850
        %852 = vrot.lane.b32.xlu0 %v849, 68
        %v853 = vpop.permute.xlu0 %852
        %vm854 = vcmask 556032
        %v855 = vsel %vm854, %v851, %v853
        %v859 = vmul.f32 %v807, %v851
        %v860 = vmul.f32 %v808, %v855
        %v861 = vmul.f32 %v809, %v853
        %v862 = vmul.f32 %v810, %v851
        %v863 = vmul.f32 %v811, %v855
        %v864 = vmul.f32 %v812, %v853
        %v871 = vrot.slane %v807, 7
        %v872 = vrot.slane %v808, 7
        %v873 = vrot.slane %v809, 7
        %v874 = vrot.slane %v810, 7
        %v875 = vsel %vm248, %v871, %v874
        %v876 = vrot.slane %v811, 7
        %v877 = vsel %vm248, %v872, %v876
        %v878 = vrot.slane %v812, 7
        %v879 = vsel %vm248, %v873, %v878
        %880 = vrot.lane.b32.xlu0 %v871, 124
        %v881 = vpop.permute.xlu0 %880
        %882 = vrot.lane.b32.xlu0 %v872, 124
        %v883 = vpop.permute.xlu0 %882
        %884 = vrot.lane.b32.xlu0 %v873, 124
        %v885 = vpop.permute.xlu0 %884
        %886 = vrot.lane.b32.xlu0 %v875, 124
        %v887 = vpop.permute.xlu0 %886
        %888 = vrot.lane.b32.xlu0 %v877, 124
        %v889 = vpop.permute.xlu0 %888
        %890 = vrot.lane.b32.xlu0 %v879, 124
        %v891 = vpop.permute.xlu0 %890
        %vm892 = vcmask 1014784
        %v893 = vsel %vm892, %v881, %v883
        %v894 = vsel %vm892, %v883, %v885
        %v895 = vsel %vm892, %v887, %v889
        %v896 = vsel %vm892, %v889, %v891
        %v909 = vrot.slane %v859, 6
        %v910 = vrot.slane %v860, 6
        %v911 = vrot.slane %v861, 6
        %v912 = vrot.slane %v862, 6
        %v913 = vsel %vm356, %v909, %v912
        %v914 = vrot.slane %v863, 6
        %v915 = vsel %vm356, %v910, %v914
        %v916 = vrot.slane %v864, 6
        %v917 = vsel %vm356, %v911, %v916
        %918 = vrot.lane.b32.xlu0 %v909, 120
        %v919 = vpop.permute.xlu0 %918
        %920 = vrot.lane.b32.xlu0 %v910, 120
        %v921 = vpop.permute.xlu0 %920
        %922 = vrot.lane.b32.xlu0 %v911, 120
        %v923 = vpop.permute.xlu0 %922
        %924 = vrot.lane.b32.xlu0 %v913, 120
        %v925 = vpop.permute.xlu0 %924
        %926 = vrot.lane.b32.xlu0 %v915, 120
        %v927 = vpop.permute.xlu0 %926
        %928 = vrot.lane.b32.xlu0 %v917, 120
        %v929 = vpop.permute.xlu0 %928
        %vm930 = vcmask 982016
        %v931 = vsel %vm930, %v919, %v921
        %v932 = vsel %vm930, %v921, %v923
        %v933 = vsel %vm930, %v925, %v927
        %v934 = vsel %vm930, %v927, %v929
        %v938 = vsel %vm248, %v836, %v893
        %v939 = vsel %vm248, %v837, %v894
        %v940 = vsel %vm248, %v838, %v885
        %v941 = vsel %vm356, %v895, %v931
        %v942 = vsel %vm356, %v896, %v932
        %v943 = vsel %vm356, %v891, %v923
        %v944 = vld [vmem:[#allocation8] sm:$0xff]
        %945 = vrot.lane.b32.xlu0 %v819, 124
        %v946 = vpop.permute.xlu0 %945
        %947 = vrot.lane.b32.xlu0 %v823, 124
        %v948 = vpop.permute.xlu0 %947
        %v949 = vsel %vm892, %v946, %v948
        %v953 = vmul.f32 %v807, %v946
        %v954 = vmul.f32 %v808, %v949
        %v955 = vmul.f32 %v809, %v948
        %v956 = vmul.f32 %v810, %v946
        %v957 = vmul.f32 %v811, %v949
        %v958 = vmul.f32 %v812, %v948
        %v959 = vld [vmem:[#allocation2 + $0x20] sm:$0xff]
        %v960 = vld [vmem:[#allocation2 + $0x50] sm:$0x1]
        %961 = vrot.lane.b32.xlu0 %v845, 4
        %v962 = vpop.permute.xlu0 %961
        %963 = vrot.lane.b32.xlu0 %v849, 4
        %v964 = vpop.permute.xlu0 %963
        %vm965 = vcmask 31744
        %v966 = vsel %vm965, %v962, %v964
        %v970 = vmul.f32 %v808, %v962
        %v971 = vmul.f32 %v809, %v966
        %v972 = vmul.f32 %v959, %v964
        %v973 = vmul.f32 %v811, %v962
        %v974 = vmul.f32 %v812, %v966
        %v975 = vmul.f32 %v960, %v964
        %v984 = vrot.slane %v970, 6
        %v985 = vrot.slane %v971, 6
        %v986 = vrot.slane %v972, 6
        %v987 = vrot.slane %v973, 6
        %v988 = vsel %vm356, %v984, %v987
        %v989 = vrot.slane %v974, 6
        %v990 = vsel %vm356, %v985, %v989
        %v991 = vrot.slane %v975, 6
        %v992 = vsel %vm356, %v986, %v991
        %993 = vrot.lane.b32.xlu0 %v984, 120
        %v994 = vpop.permute.xlu0 %993
        %995 = vrot.lane.b32.xlu0 %v985, 120
        %v996 = vpop.permute.xlu0 %995
        %997 = vrot.lane.b32.xlu0 %v986, 120
        %v998 = vpop.permute.xlu0 %997
        %999 = vrot.lane.b32.xlu0 %v988, 120
        %v1000 = vpop.permute.xlu0 %999
        %1001 = vrot.lane.b32.xlu0 %v990, 120
        %v1002 = vpop.permute.xlu0 %1001
        %1003 = vrot.lane.b32.xlu0 %v992, 120
        %v1004 = vpop.permute.xlu0 %1003
        %v1005 = vsel %vm930, %v994, %v996
        %v1006 = vsel %vm930, %v996, %v998
        %v1007 = vsel %vm930, %v1000, %v1002
        %v1008 = vsel %vm930, %v1002, %v1004
        %v1012 = vsel %vm248, %v956, %v883
        %v1013 = vsel %vm248, %v957, %v894
        %v1014 = vsel %vm248, %v958, %v885
        %v1015 = vsel %vm356, %v889, %v994
        %v1016 = vsel %vm356, %v896, %v1005
        %v1017 = vsel %vm356, %v891, %v1006
        %1019 = vrot.lane.b32.xlu0 %v944, 101
        %v1020 = vpop.permute.xlu0 %1019
        %1030 = vrot.lane.b32.xlu0 %v953, 4
        %v1031 = vpop.permute.xlu0 %1030
        %1032 = vrot.lane.b32.xlu0 %v954, 4
        %v1033 = vpop.permute.xlu0 %1032
        %1034 = vrot.lane.b32.xlu0 %v955, 4
        %v1035 = vpop.permute.xlu0 %1034
        %1036 = vrot.lane.b32.xlu0 %v1012, 4
        %v1037 = vpop.permute.xlu0 %1036
        %1038 = vrot.lane.b32.xlu0 %v1013, 4
        %v1039 = vpop.permute.xlu0 %1038
        %1040 = vrot.lane.b32.xlu0 %v1014, 4
        %v1041 = vpop.permute.xlu0 %1040
        %1042 = vrot.lane.b32.xlu0 %v1015, 4
        %v1043 = vpop.permute.xlu0 %1042
        %1044 = vrot.lane.b32.xlu0 %v1016, 4
        %v1045 = vpop.permute.xlu0 %1044
        %1046 = vrot.lane.b32.xlu0 %v1017, 4
        %v1047 = vpop.permute.xlu0 %1046
        %1048 = vrot.lane.b32.xlu0 %v1000, 4
        %v1049 = vpop.permute.xlu0 %1048
        %1050 = vrot.lane.b32.xlu0 %v1007, 4
        %v1051 = vpop.permute.xlu0 %1050
        %1052 = vrot.lane.b32.xlu0 %v1008, 4
        %v1053 = vpop.permute.xlu0 %1052
        %v1054 = vsel %vm965, %v1031, %v1033
        %v1055 = vsel %vm965, %v1033, %v1035
        %v1056 = vsel %vm965, %v1037, %v1039
        %v1057 = vsel %vm965, %v1039, %v1041
        %v1058 = vsel %vm965, %v1043, %v1045
        %v1059 = vsel %vm965, %v1045, %v1047
        %v1060 = vsel %vm965, %v1049, %v1051
        %v1061 = vsel %vm965, %v1051, %v1053
        %vm1068 = vcmask 220160
        %v1069 = vsel %vm1068, %v1020, 0
        %v1071 = vsel %vm457, %v1060, 0
        %v1073 = vsel %vm457, %v1061, 0
        %1075 = vmatprep.subr.mxu0 %v1055
        %1076 = vmatpush1.msra.mxu0 %v1054
        %1077 = vmatprep.subr.mxu0 %v1057
        %1078 = vmatpush1.msra.mxu0 %v1056
        %1079 = vmatprep.subr.mxu0 %v1059
        %1080 = vmatpush1.msra.mxu0 %v1058
        %1081 = vmatprep.subr.mxu0 %v1073
        %1082 = vmatpush1.msra.mxu0 %v1071
        %1083 = vmatprep.subr.mxu0 0.0
        %1084 = vmatpush1.msra.mxu0 0.0
        %1085 = vmatprep.subr.mxu0 0.0
        %1086 = vmatpush1.msra.mxu0 0.0
        %1087 = vmatprep.subr.mxu0 0.0
        %1088 = vmatpush1.msra.mxu0 0.0
        %1089 = vmatprep.subr.mxu0 0.0
        %1090 = vmatpush1.msra.mxu0 0.0
        %1091 = vmatprep.subr.mxu0 0.0
        %1092 = vmatpush1.msra.mxu0 0.0
        %1093 = vmatprep.subr.mxu0 0.0
        %1094 = vmatpush1.msra.mxu0 0.0
        %1095 = vmatprep.subr.mxu0 0.0
        %1096 = vmatpush1.msra.mxu0 0.0
        %1097 = vmatprep.subr.mxu0 0.0
        %1098 = vmatpush1.msra.mxu0 0.0
        %1099 = vmatprep.subr.mxu0 0.0
        %1100 = vmatpush1.msra.mxu0 0.0
        %1101 = vmatprep.subr.mxu0 0.0
        %1102 = vmatpush1.msra.mxu0 0.0
        %1103 = vmatprep.subr.mxu0 0.0
        %1104 = vmatpush1.msra.mxu0 0.0
        %1105 = vmatprep.subr.mxu0 0.0
        %1106 = vmatpush1.msra.mxu0 0.0
        %1107 = vmatprep.subr.mxu0 0.0
        %1108 = vmatpush1.msra.mxu0 0.0
        %1109 = vmatprep.subr.mxu0 0.0
        %1110 = vmatpush1.msra.mxu0 0.0
        %1111 = vmatprep.subr.mxu0 0.0
        %1112 = vmatpush1.msra.mxu0 0.0
        %1113 = vmatprep.subr.mxu0 0.0
        %1114 = vmatpush1.msra.mxu0 0.0
        %1115 = vmatprep.subr.mxu0 0.0
        %1116 = vmatpush1.msra.mxu0 0.0
        %1117 = vmatprep.subr.mxu0 0.0
        %1118 = vmatpush1.msra.mxu0 0.0
        %1119 = vmatprep.subr.mxu0 0.0
        %1120 = vmatpush1.msra.mxu0 0.0
        %1121 = vmatprep.subr.mxu0 0.0
        %1122 = vmatpush1.msra.mxu0 0.0
        %1123 = vmatprep.subr.mxu0 0.0
        %1124 = vmatpush1.msra.mxu0 0.0
        %1125 = vmatprep.subr.mxu0 0.0
        %1126 = vmatpush1.msra.mxu0 0.0
        %1127 = vmatprep.subr.mxu0 0.0
        %1128 = vmatpush1.msra.mxu0 0.0
        %1129 = vmatprep.subr.mxu0 0.0
        %1130 = vmatpush1.msra.mxu0 0.0
        %1131 = vmatprep.subr.mxu0 0.0
        %1132 = vmatpush1.msra.mxu0 0.0
        %1133 = vmatprep.subr.mxu0 0.0
        %1134 = vmatpush1.msra.mxu0 0.0
        %1135 = vmatprep.subr.mxu0 0.0
        %1136 = vmatpush1.msra.mxu0 0.0
        %1137 = vmatprep.subr.mxu0 0.0
        %1138 = vmatpush1.msra.mxu0 0.0
        %1139 = vmatprep.mubr.f32.mxu0 0.0
        %1140 = vmatmul.mubr.f32.gmra.mrb[0].mxu0 %v1069
        %v1141 = vpop.f32.mrb[0].mxu0
        %v1142 = vadd.f32 0.0, %v1141
        %v1143 = vpop.f32.mrb[0].mxu0
        %v1144 = vadd.f32 0.0, %v1143
        %1145 = vdwg.mxu0
        %1155 = vrot.lane.b32.xlu0 %v833, 68
        %v1156 = vpop.permute.xlu0 %1155
        %1157 = vrot.lane.b32.xlu0 %v834, 68
        %v1158 = vpop.permute.xlu0 %1157
        %1159 = vrot.lane.b32.xlu0 %v835, 68
        %v1160 = vpop.permute.xlu0 %1159
        %1161 = vrot.lane.b32.xlu0 %v938, 68
        %v1162 = vpop.permute.xlu0 %1161
        %1163 = vrot.lane.b32.xlu0 %v939, 68
        %v1164 = vpop.permute.xlu0 %1163
        %1165 = vrot.lane.b32.xlu0 %v940, 68
        %v1166 = vpop.permute.xlu0 %1165
        %1167 = vrot.lane.b32.xlu0 %v941, 68
        %v1168 = vpop.permute.xlu0 %1167
        %1169 = vrot.lane.b32.xlu0 %v942, 68
        %v1170 = vpop.permute.xlu0 %1169
        %1171 = vrot.lane.b32.xlu0 %v943, 68
        %v1172 = vpop.permute.xlu0 %1171
        %1173 = vrot.lane.b32.xlu0 %v933, 68
        %v1174 = vpop.permute.xlu0 %1173
        %1175 = vrot.lane.b32.xlu0 %v934, 68
        %v1176 = vpop.permute.xlu0 %1175
        %1177 = vrot.lane.b32.xlu0 %v929, 68
        %v1178 = vpop.permute.xlu0 %1177
        %v1179 = vsel %vm854, %v1156, %v1158
        %v1180 = vsel %vm854, %v1158, %v1160
        %v1181 = vsel %vm854, %v1162, %v1164
        %v1182 = vsel %vm854, %v1164, %v1166
        %v1183 = vsel %vm854, %v1168, %v1170
        %v1184 = vsel %vm854, %v1170, %v1172
        %v1185 = vsel %vm854, %v1174, %v1176
        %v1186 = vsel %vm854, %v1176, %v1178
        %v1193 = vsel %vm1068, %v944, 0
        %v1195 = vsel %vm457, %v1185, 0
        %v1197 = vsel %vm457, %v1186, 0
        %1199 = vmatprep.subr.mxu0 %v1180
        %1200 = vmatpush1.msra.mxu0 %v1179
        %1201 = vmatprep.subr.mxu0 %v1182
        %1202 = vmatpush1.msra.mxu0 %v1181
        %1203 = vmatprep.subr.mxu0 %v1184
        %1204 = vmatpush1.msra.mxu0 %v1183
        %1205 = vmatprep.subr.mxu0 %v1197
        %1206 = vmatpush1.msra.mxu0 %v1195
        %1207 = vmatprep.subr.mxu0 0.0
        %1208 = vmatpush1.msra.mxu0 0.0
        %1209 = vmatprep.subr.mxu0 0.0
        %1210 = vmatpush1.msra.mxu0 0.0
        %1211 = vmatprep.subr.mxu0 0.0
        %1212 = vmatpush1.msra.mxu0 0.0
        %1213 = vmatprep.subr.mxu0 0.0
        %1214 = vmatpush1.msra.mxu0 0.0
        %1215 = vmatprep.subr.mxu0 0.0
        %1216 = vmatpush1.msra.mxu0 0.0
        %1217 = vmatprep.subr.mxu0 0.0
        %1218 = vmatpush1.msra.mxu0 0.0
        %1219 = vmatprep.subr.mxu0 0.0
        %1220 = vmatpush1.msra.mxu0 0.0
        %1221 = vmatprep.subr.mxu0 0.0
        %1222 = vmatpush1.msra.mxu0 0.0
        %1223 = vmatprep.subr.mxu0 0.0
        %1224 = vmatpush1.msra.mxu0 0.0
        %1225 = vmatprep.subr.mxu0 0.0
        %1226 = vmatpush1.msra.mxu0 0.0
        %1227 = vmatprep.subr.mxu0 0.0
        %1228 = vmatpush1.msra.mxu0 0.0
        %1229 = vmatprep.subr.mxu0 0.0
        %1230 = vmatpush1.msra.mxu0 0.0
        %1231 = vmatprep.subr.mxu0 0.0
        %1232 = vmatpush1.msra.mxu0 0.0
        %1233 = vmatprep.subr.mxu0 0.0
        %1234 = vmatpush1.msra.mxu0 0.0
        %1235 = vmatprep.subr.mxu0 0.0
        %1236 = vmatpush1.msra.mxu0 0.0
        %1237 = vmatprep.subr.mxu0 0.0
        %1238 = vmatpush1.msra.mxu0 0.0
        %1239 = vmatprep.subr.mxu0 0.0
        %1240 = vmatpush1.msra.mxu0 0.0
        %1241 = vmatprep.subr.mxu0 0.0
        %1242 = vmatpush1.msra.mxu0 0.0
        %1243 = vmatprep.subr.mxu0 0.0
        %1244 = vmatpush1.msra.mxu0 0.0
        %1245 = vmatprep.subr.mxu0 0.0
        %1246 = vmatpush1.msra.mxu0 0.0
        %1247 = vmatprep.subr.mxu0 0.0
        %1248 = vmatpush1.msra.mxu0 0.0
        %1249 = vmatprep.subr.mxu0 0.0
        %1250 = vmatpush1.msra.mxu0 0.0
        %1251 = vmatprep.subr.mxu0 0.0
        %1252 = vmatpush1.msra.mxu0 0.0
        %1253 = vmatprep.subr.mxu0 0.0
        %1254 = vmatpush1.msra.mxu0 0.0
        %1255 = vmatprep.subr.mxu0 0.0
        %1256 = vmatpush1.msra.mxu0 0.0
        %1257 = vmatprep.subr.mxu0 0.0
        %1258 = vmatpush1.msra.mxu0 0.0
        %1259 = vmatprep.subr.mxu0 0.0
        %1260 = vmatpush1.msra.mxu0 0.0
        %1261 = vmatprep.subr.mxu0 0.0
        %1262 = vmatpush1.msra.mxu0 0.0
        %1263 = vmatprep.mubr.f32.mxu0 0.0
        %1264 = vmatmul.mubr.f32.gmra.mrb[0].mxu0 %v1193
        %v1265 = vpop.f32.mrb[0].mxu0
        %v1266 = vadd.f32 %v1142, %v1265
        %v1267 = vpop.f32.mrb[0].mxu0
        %v1268 = vadd.f32 %v1144, %v1267
        %1269 = vdwg.mxu0
        %v1270 = vmul.f32 %v808, %v825
        %v1271 = vmul.f32 %v809, %v829
        %v1272 = vmul.f32 %v959, %v827
        %v1273 = vmul.f32 %v811, %v825
        %v1274 = vmul.f32 %v812, %v829
        %v1275 = vmul.f32 %v960, %v827
        %v1276 = vmul.f32 %v808, %v851
        %v1277 = vmul.f32 %v809, %v855
        %v1278 = vmul.f32 %v959, %v853
        %v1279 = vmul.f32 %v811, %v851
        %v1280 = vmul.f32 %v812, %v855
        %v1281 = vmul.f32 %v960, %v853
        %v1284 = vrot.slane %v959, 7
        %v1285 = vrot.slane %v960, 7
        %v1286 = vsel %vm248, %v1284, %v1285
        %1287 = vrot.lane.b32.xlu0 %v1284, 124
        %v1288 = vpop.permute.xlu0 %1287
        %1289 = vrot.lane.b32.xlu0 %v1286, 124
        %v1290 = vpop.permute.xlu0 %1289
        %v1291 = vsel %vm892, %v885, %v1288
        %v1292 = vsel %vm892, %v891, %v1290
        %v1303 = vrot.slane %v1276, 6
        %v1304 = vrot.slane %v1277, 6
        %v1305 = vrot.slane %v1278, 6
        %v1306 = vrot.slane %v1279, 6
        %v1307 = vsel %vm356, %v1303, %v1306
        %v1308 = vrot.slane %v1280, 6
        %v1309 = vsel %vm356, %v1304, %v1308
        %v1310 = vrot.slane %v1281, 6
        %v1311 = vsel %vm356, %v1305, %v1310
        %1312 = vrot.lane.b32.xlu0 %v1303, 120
        %v1313 = vpop.permute.xlu0 %1312
        %1314 = vrot.lane.b32.xlu0 %v1304, 120
        %v1315 = vpop.permute.xlu0 %1314
        %1316 = vrot.lane.b32.xlu0 %v1305, 120
        %v1317 = vpop.permute.xlu0 %1316
        %1318 = vrot.lane.b32.xlu0 %v1307, 120
        %v1319 = vpop.permute.xlu0 %1318
        %1320 = vrot.lane.b32.xlu0 %v1309, 120
        %v1321 = vpop.permute.xlu0 %1320
        %1322 = vrot.lane.b32.xlu0 %v1311, 120
        %v1323 = vpop.permute.xlu0 %1322
        %v1324 = vsel %vm930, %v1313, %v1315
        %v1325 = vsel %vm930, %v1315, %v1317
        %v1326 = vsel %vm930, %v1319, %v1321
        %v1327 = vsel %vm930, %v1321, %v1323
        %v1331 = vsel %vm248, %v1273, %v894
        %v1332 = vsel %vm248, %v1274, %v1291
        %v1333 = vsel %vm248, %v1275, %v1288
        %v1334 = vsel %vm356, %v896, %v1324
        %v1335 = vsel %vm356, %v1292, %v1325
        %v1336 = vsel %vm356, %v1290, %v1317
        %1337 = vrot.lane.b32.xlu0 %v944, 74
        %v1338 = vpop.permute.xlu0 %1337
        %1348 = vrot.lane.b32.xlu0 %v1270, 68
        %v1349 = vpop.permute.xlu0 %1348
        %1350 = vrot.lane.b32.xlu0 %v1271, 68
        %v1351 = vpop.permute.xlu0 %1350
        %1352 = vrot.lane.b32.xlu0 %v1272, 68
        %v1353 = vpop.permute.xlu0 %1352
        %1354 = vrot.lane.b32.xlu0 %v1331, 68
        %v1355 = vpop.permute.xlu0 %1354
        %1356 = vrot.lane.b32.xlu0 %v1332, 68
        %v1357 = vpop.permute.xlu0 %1356
        %1358 = vrot.lane.b32.xlu0 %v1333, 68
        %v1359 = vpop.permute.xlu0 %1358
        %1360 = vrot.lane.b32.xlu0 %v1334, 68
        %v1361 = vpop.permute.xlu0 %1360
        %1362 = vrot.lane.b32.xlu0 %v1335, 68
        %v1363 = vpop.permute.xlu0 %1362
        %1364 = vrot.lane.b32.xlu0 %v1336, 68
        %v1365 = vpop.permute.xlu0 %1364
        %1366 = vrot.lane.b32.xlu0 %v1326, 68
        %v1367 = vpop.permute.xlu0 %1366
        %1368 = vrot.lane.b32.xlu0 %v1327, 68
        %v1369 = vpop.permute.xlu0 %1368
        %1370 = vrot.lane.b32.xlu0 %v1323, 68
        %v1371 = vpop.permute.xlu0 %1370
        %v1372 = vsel %vm854, %v1349, %v1351
        %v1373 = vsel %vm854, %v1351, %v1353
        %v1374 = vsel %vm854, %v1355, %v1357
        %v1375 = vsel %vm854, %v1357, %v1359
        %v1376 = vsel %vm854, %v1361, %v1363
        %v1377 = vsel %vm854, %v1363, %v1365
        %v1378 = vsel %vm854, %v1367, %v1369
        %v1379 = vsel %vm854, %v1369, %v1371
        %v1386 = vsel %vm1068, %v1338, 0
        %v1388 = vsel %vm457, %v1378, 0
        %v1390 = vsel %vm457, %v1379, 0
        %1392 = vmatprep.subr.mxu0 %v1373
        %1393 = vmatpush1.msra.mxu0 %v1372
        %1394 = vmatprep.subr.mxu0 %v1375
        %1395 = vmatpush1.msra.mxu0 %v1374
        %1396 = vmatprep.subr.mxu0 %v1377
        %1397 = vmatpush1.msra.mxu0 %v1376
        %1398 = vmatprep.subr.mxu0 %v1390
        %1399 = vmatpush1.msra.mxu0 %v1388
        %1400 = vmatprep.subr.mxu0 0.0
        %1401 = vmatpush1.msra.mxu0 0.0
        %1402 = vmatprep.subr.mxu0 0.0
        %1403 = vmatpush1.msra.mxu0 0.0
        %1404 = vmatprep.subr.mxu0 0.0
        %1405 = vmatpush1.msra.mxu0 0.0
        %1406 = vmatprep.subr.mxu0 0.0
        %1407 = vmatpush1.msra.mxu0 0.0
        %1408 = vmatprep.subr.mxu0 0.0
        %1409 = vmatpush1.msra.mxu0 0.0
        %1410 = vmatprep.subr.mxu0 0.0
        %1411 = vmatpush1.msra.mxu0 0.0
        %1412 = vmatprep.subr.mxu0 0.0
        %1413 = vmatpush1.msra.mxu0 0.0
        %1414 = vmatprep.subr.mxu0 0.0
        %1415 = vmatpush1.msra.mxu0 0.0
        %1416 = vmatprep.subr.mxu0 0.0
        %1417 = vmatpush1.msra.mxu0 0.0
        %1418 = vmatprep.subr.mxu0 0.0
        %1419 = vmatpush1.msra.mxu0 0.0
        %1420 = vmatprep.subr.mxu0 0.0
        %1421 = vmatpush1.msra.mxu0 0.0
        %1422 = vmatprep.subr.mxu0 0.0
        %1423 = vmatpush1.msra.mxu0 0.0
        %1424 = vmatprep.subr.mxu0 0.0
        %1425 = vmatpush1.msra.mxu0 0.0
        %1426 = vmatprep.subr.mxu0 0.0
        %1427 = vmatpush1.msra.mxu0 0.0
        %1428 = vmatprep.subr.mxu0 0.0
        %1429 = vmatpush1.msra.mxu0 0.0
        %1430 = vmatprep.subr.mxu0 0.0
        %1431 = vmatpush1.msra.mxu0 0.0
        %1432 = vmatprep.subr.mxu0 0.0
        %1433 = vmatpush1.msra.mxu0 0.0
        %1434 = vmatprep.subr.mxu0 0.0
        %1435 = vmatpush1.msra.mxu0 0.0
        %1436 = vmatprep.subr.mxu0 0.0
        %1437 = vmatpush1.msra.mxu0 0.0
        %1438 = vmatprep.subr.mxu0 0.0
        %1439 = vmatpush1.msra.mxu0 0.0
        %1440 = vmatprep.subr.mxu0 0.0
        %1441 = vmatpush1.msra.mxu0 0.0
        %1442 = vmatprep.subr.mxu0 0.0
        %1443 = vmatpush1.msra.mxu0 0.0
        %1444 = vmatprep.subr.mxu0 0.0
        %1445 = vmatpush1.msra.mxu0 0.0
        %1446 = vmatprep.subr.mxu0 0.0
        %1447 = vmatpush1.msra.mxu0 0.0
        %1448 = vmatprep.subr.mxu0 0.0
        %1449 = vmatpush1.msra.mxu0 0.0
        %1450 = vmatprep.subr.mxu0 0.0
        %1451 = vmatpush1.msra.mxu0 0.0
        %1452 = vmatprep.subr.mxu0 0.0
        %1453 = vmatpush1.msra.mxu0 0.0
        %1454 = vmatprep.subr.mxu0 0.0
        %1455 = vmatpush1.msra.mxu0 0.0
        %1456 = vmatprep.mubr.f32.mxu0 0.0
        %1457 = vmatmul.mubr.f32.gmra.mrb[0].mxu0 %v1386
        %v1458 = vpop.f32.mrb[0].mxu0
        %v1459 = vadd.f32 0.0, %v1458
        %v1460 = vpop.f32.mrb[0].mxu0
        %v1461 = vadd.f32 0.0, %v1460
        %1462 = vdwg.mxu0
        %v1463 = vadd.f32 %v1266, %v1459
        %v1464 = vadd.f32 %v1268, %v1461
        %1465 = vset.pattern.permute.xlu0 12
        %1466 = vperm.xlu0 %1465, %v222
        %v1467 = vpop.permute.xlu0 %1466
        %v1469 = vadd.f32 %v1463, %v1467
        %v1470 = vadd.f32 %v1464, %v1467
        %v1471 = vmax.f32 %v1469, 0.0
        %v1472 = vmax.f32 %v1470, 0.0
        %1473 = vst [vmem:[#allocation2 + $0x10] sm:$0xff] %v1471
        %1474 = vst [vmem:[#allocation2 + $0x18] sm:$0xff] %v1472
        %v1475 = vld [vmem:[#allocation2] sm:$0xff]
        %v1476 = vld [vmem:[#allocation2 + $0x8] sm:$0xff]
        %v1477 = vld [vmem:[#allocation2 + $0x10] sm:$0xff]
        %v1478 = vld [vmem:[#allocation2 + $0x30] sm:$0x1]
        %v1479 = vld [vmem:[#allocation2 + $0x38] sm:$0x1]
        %v1480 = vld [vmem:[#allocation2 + $0x40] sm:$0x1]
        %s1481 = scalar_lea.vmem [#allocation6], 6
        %v1482 = vld [vmem:[%s1481] ss:$8 sm:$0x3]
        %v1484 = vlaneseq
        %v1485 = vshrl.u32 %v1484, 7
        %v1486 = vsub.s32 0, %v1485
        %v1487 = vrot.slane %v1482, %v1486
        %v1488 = vlaneseq
        %v1489 = vshrl.u32 %v1488, 7
        %v1490 = vsub.s32 1, %v1489
        %v1491 = vrot.slane %v1482, %v1490
        %1492 = vrot.lane.b32.xlu0 %v1487, 120
        %v1493 = vpop.permute.xlu0 %1492
        %1494 = vrot.lane.b32.xlu0 %v1491, 120
        %v1495 = vpop.permute.xlu0 %1494
        %v1496 = vsel %vm930, %v1493, %v1495
        %v1500 = vmul.f32 %v1475, %v1493
        %v1501 = vmul.f32 %v1476, %v1496
        %v1502 = vmul.f32 %v1477, %v1495
        %v1503 = vmul.f32 %v1478, %v1493
        %v1504 = vmul.f32 %v1479, %v1496
        %v1505 = vmul.f32 %v1480, %v1495
        %v1506 = vld [vmem:[#allocation2 + $0x18] sm:$0xff]
        %v1507 = vld [vmem:[#allocation2 + $0x48] sm:$0x1]
        %s1508 = scalar_lea.vmem [#allocation6], 16
        %v1509 = vld [vmem:[%s1508] ss:$8 sm:$0x3]
        %v1511 = vlaneseq
        %v1512 = vshrl.u32 %v1511, 7
        %v1513 = vsub.s32 0, %v1512
        %v1514 = vrot.slane %v1509, %v1513
        %v1515 = vlaneseq
        %v1516 = vshrl.u32 %v1515, 7
        %v1517 = vsub.s32 1, %v1516
        %v1518 = vrot.slane %v1509, %v1517
        %1519 = vrot.lane.b32.xlu0 %v1514, 8
        %v1520 = vpop.permute.xlu0 %1519
        %1521 = vrot.lane.b32.xlu0 %v1518, 8
        %v1522 = vpop.permute.xlu0 %1521
        %vm1523 = vcmask 64512
        %v1524 = vsel %vm1523, %v1520, %v1522
        %v1528 = vmul.f32 %v1476, %v1520
        %v1529 = vmul.f32 %v1477, %v1524
        %v1530 = vmul.f32 %v1506, %v1522
        %v1531 = vmul.f32 %v1479, %v1520
        %v1532 = vmul.f32 %v1480, %v1524
        %v1533 = vmul.f32 %v1507, %v1522
        %v1538 = vrot.slane %v1476, 7
        %v1539 = vrot.slane %v1477, 7
        %v1540 = vrot.slane %v1479, 7
        %v1541 = vsel %vm248, %v1538, %v1540
        %v1542 = vrot.slane %v1480, 7
        %v1543 = vsel %vm248, %v1539, %v1542
        %1544 = vrot.lane.b32.xlu0 %v1538, 120
        %v1545 = vpop.permute.xlu0 %1544
        %1546 = vrot.lane.b32.xlu0 %v1539, 120
        %v1547 = vpop.permute.xlu0 %1546
        %1548 = vrot.lane.b32.xlu0 %v1541, 120
        %v1549 = vpop.permute.xlu0 %1548
        %1550 = vrot.lane.b32.xlu0 %v1543, 120
        %v1551 = vpop.permute.xlu0 %1550
        %v1552 = vsel %vm930, %v1545, %v1547
        %v1553 = vsel %vm930, %v1549, %v1551
        %v1566 = vrot.slane %v1528, 6
        %v1567 = vrot.slane %v1529, 6
        %v1568 = vrot.slane %v1530, 6
        %v1569 = vrot.slane %v1531, 6
        %v1570 = vsel %vm356, %v1566, %v1569
        %v1571 = vrot.slane %v1532, 6
        %v1572 = vsel %vm356, %v1567, %v1571
        %v1573 = vrot.slane %v1533, 6
        %v1574 = vsel %vm356, %v1568, %v1573
        %1575 = vrot.lane.b32.xlu0 %v1566, 112
        %v1576 = vpop.permute.xlu0 %1575
        %1577 = vrot.lane.b32.xlu0 %v1567, 112
        %v1578 = vpop.permute.xlu0 %1577
        %1579 = vrot.lane.b32.xlu0 %v1568, 112
        %v1580 = vpop.permute.xlu0 %1579
        %1581 = vrot.lane.b32.xlu0 %v1570, 112
        %v1582 = vpop.permute.xlu0 %1581
        %1583 = vrot.lane.b32.xlu0 %v1572, 112
        %v1584 = vpop.permute.xlu0 %1583
        %1585 = vrot.lane.b32.xlu0 %v1574, 112
        %v1586 = vpop.permute.xlu0 %1585
        %vm1587 = vcmask 916480
        %v1588 = vsel %vm1587, %v1576, %v1578
        %v1589 = vsel %vm1587, %v1578, %v1580
        %v1590 = vsel %vm1587, %v1582, %v1584
        %v1591 = vsel %vm1587, %v1584, %v1586
        %v1595 = vsel %vm248, %v1503, %v1545
        %v1596 = vsel %vm248, %v1504, %v1552
        %v1597 = vsel %vm248, %v1505, %v1547
        %v1598 = vsel %vm356, %v1549, %v1576
        %v1599 = vsel %vm356, %v1553, %v1588
        %v1600 = vsel %vm356, %v1551, %v1589
        %v1601 = vld [vmem:[#allocation8 + $0x8] sm:$0xff]
        %v1602 = vmul.f32 %v1476, %v1493
        %v1603 = vmul.f32 %v1477, %v1496
        %v1604 = vmul.f32 %v1506, %v1495
        %v1605 = vmul.f32 %v1479, %v1493
        %v1606 = vmul.f32 %v1480, %v1496
        %v1607 = vmul.f32 %v1507, %v1495
        %v1608 = vld [vmem:[#allocation2 + $0x20] sm:$0xff]
        %v1609 = vld [vmem:[#allocation2 + $0x50] sm:$0x1]
        %v1610 = vmul.f32 %v1477, %v1520
        %v1611 = vmul.f32 %v1506, %v1524
        %v1612 = vmul.f32 %v1608, %v1522
        %v1613 = vmul.f32 %v1480, %v1520
        %v1614 = vmul.f32 %v1507, %v1524
        %v1615 = vmul.f32 %v1609, %v1522
        %v1618 = vrot.slane %v1506, 7
        %v1619 = vrot.slane %v1507, 7
        %v1620 = vsel %vm248, %v1618, %v1619
        %1621 = vrot.lane.b32.xlu0 %v1618, 120
        %v1622 = vpop.permute.xlu0 %1621
        %1623 = vrot.lane.b32.xlu0 %v1620, 120
        %v1624 = vpop.permute.xlu0 %1623
        %v1625 = vsel %vm930, %v1547, %v1622
        %v1626 = vsel %vm930, %v1551, %v1624
        %v1637 = vrot.slane %v1610, 6
        %v1638 = vrot.slane %v1611, 6
        %v1639 = vrot.slane %v1612, 6
        %v1640 = vrot.slane %v1613, 6
        %v1641 = vsel %vm356, %v1637, %v1640
        %v1642 = vrot.slane %v1614, 6
        %v1643 = vsel %vm356, %v1638, %v1642
        %v1644 = vrot.slane %v1615, 6
        %v1645 = vsel %vm356, %v1639, %v1644
        %1646 = vrot.lane.b32.xlu0 %v1637, 112
        %v1647 = vpop.permute.xlu0 %1646
        %1648 = vrot.lane.b32.xlu0 %v1638, 112
        %v1649 = vpop.permute.xlu0 %1648
        %1650 = vrot.lane.b32.xlu0 %v1639, 112
        %v1651 = vpop.permute.xlu0 %1650
        %1652 = vrot.lane.b32.xlu0 %v1641, 112
        %v1653 = vpop.permute.xlu0 %1652
        %1654 = vrot.lane.b32.xlu0 %v1643, 112
        %v1655 = vpop.permute.xlu0 %1654
        %1656 = vrot.lane.b32.xlu0 %v1645, 112
        %v1657 = vpop.permute.xlu0 %1656
        %v1658 = vsel %vm1587, %v1647, %v1649
        %v1659 = vsel %vm1587, %v1649, %v1651
        %v1660 = vsel %vm1587, %v1653, %v1655
        %v1661 = vsel %vm1587, %v1655, %v1657
        %v1665 = vsel %vm248, %v1605, %v1547
        %v1666 = vsel %vm248, %v1606, %v1625
        %v1667 = vsel %vm248, %v1607, %v1622
        %v1668 = vsel %vm356, %v1551, %v1647
        %v1669 = vsel %vm356, %v1626, %v1658
        %v1670 = vsel %vm356, %v1624, %v1659
        %1672 = vrot.lane.b32.xlu0 %v1601, 101
        %v1673 = vpop.permute.xlu0 %1672
        %1683 = vrot.lane.b32.xlu0 %v1602, 8
        %v1684 = vpop.permute.xlu0 %1683
        %1685 = vrot.lane.b32.xlu0 %v1603, 8
        %v1686 = vpop.permute.xlu0 %1685
        %1687 = vrot.lane.b32.xlu0 %v1604, 8
        %v1688 = vpop.permute.xlu0 %1687
        %1689 = vrot.lane.b32.xlu0 %v1665, 8
        %v1690 = vpop.permute.xlu0 %1689
        %1691 = vrot.lane.b32.xlu0 %v1666, 8
        %v1692 = vpop.permute.xlu0 %1691
        %1693 = vrot.lane.b32.xlu0 %v1667, 8
        %v1694 = vpop.permute.xlu0 %1693
        %1695 = vrot.lane.b32.xlu0 %v1668, 8
        %v1696 = vpop.permute.xlu0 %1695
        %1697 = vrot.lane.b32.xlu0 %v1669, 8
        %v1698 = vpop.permute.xlu0 %1697
        %1699 = vrot.lane.b32.xlu0 %v1670, 8
        %v1700 = vpop.permute.xlu0 %1699
        %1701 = vrot.lane.b32.xlu0 %v1653, 8
        %v1702 = vpop.permute.xlu0 %1701
        %1703 = vrot.lane.b32.xlu0 %v1660, 8
        %v1704 = vpop.permute.xlu0 %1703
        %1705 = vrot.lane.b32.xlu0 %v1661, 8
        %v1706 = vpop.permute.xlu0 %1705
        %v1707 = vsel %vm1523, %v1684, %v1686
        %v1708 = vsel %vm1523, %v1686, %v1688
        %v1709 = vsel %vm1523, %v1690, %v1692
        %v1710 = vsel %vm1523, %v1692, %v1694
        %v1711 = vsel %vm1523, %v1696, %v1698
        %v1712 = vsel %vm1523, %v1698, %v1700
        %v1713 = vsel %vm1523, %v1702, %v1704
        %v1714 = vsel %vm1523, %v1704, %v1706
        %v1721 = vsel %vm1068, %v1673, 0
        %v1723 = vsel %vm457, %v1713, 0
        %v1725 = vsel %vm457, %v1714, 0
        %1727 = vmatprep.subr.mxu0 %v1708
        %1728 = vmatpush1.msra.mxu0 %v1707
        %1729 = vmatprep.subr.mxu0 %v1710
        %1730 = vmatpush1.msra.mxu0 %v1709
        %1731 = vmatprep.subr.mxu0 %v1712
        %1732 = vmatpush1.msra.mxu0 %v1711
        %1733 = vmatprep.subr.mxu0 %v1725
        %1734 = vmatpush1.msra.mxu0 %v1723
        %1735 = vmatprep.subr.mxu0 0.0
        %1736 = vmatpush1.msra.mxu0 0.0
        %1737 = vmatprep.subr.mxu0 0.0
        %1738 = vmatpush1.msra.mxu0 0.0
        %1739 = vmatprep.subr.mxu0 0.0
        %1740 = vmatpush1.msra.mxu0 0.0
        %1741 = vmatprep.subr.mxu0 0.0
        %1742 = vmatpush1.msra.mxu0 0.0
        %1743 = vmatprep.subr.mxu0 0.0
        %1744 = vmatpush1.msra.mxu0 0.0
        %1745 = vmatprep.subr.mxu0 0.0
        %1746 = vmatpush1.msra.mxu0 0.0
        %1747 = vmatprep.subr.mxu0 0.0
        %1748 = vmatpush1.msra.mxu0 0.0
        %1749 = vmatprep.subr.mxu0 0.0
        %1750 = vmatpush1.msra.mxu0 0.0
        %1751 = vmatprep.subr.mxu0 0.0
        %1752 = vmatpush1.msra.mxu0 0.0
        %1753 = vmatprep.subr.mxu0 0.0
        %1754 = vmatpush1.msra.mxu0 0.0
        %1755 = vmatprep.subr.mxu0 0.0
        %1756 = vmatpush1.msra.mxu0 0.0
        %1757 = vmatprep.subr.mxu0 0.0
        %1758 = vmatpush1.msra.mxu0 0.0
        %1759 = vmatprep.subr.mxu0 0.0
        %1760 = vmatpush1.msra.mxu0 0.0
        %1761 = vmatprep.subr.mxu0 0.0
        %1762 = vmatpush1.msra.mxu0 0.0
        %1763 = vmatprep.subr.mxu0 0.0
        %1764 = vmatpush1.msra.mxu0 0.0
        %1765 = vmatprep.subr.mxu0 0.0
        %1766 = vmatpush1.msra.mxu0 0.0
        %1767 = vmatprep.subr.mxu0 0.0
        %1768 = vmatpush1.msra.mxu0 0.0
        %1769 = vmatprep.subr.mxu0 0.0
        %1770 = vmatpush1.msra.mxu0 0.0
        %1771 = vmatprep.subr.mxu0 0.0
        %1772 = vmatpush1.msra.mxu0 0.0
        %1773 = vmatprep.subr.mxu0 0.0
        %1774 = vmatpush1.msra.mxu0 0.0
        %1775 = vmatprep.subr.mxu0 0.0
        %1776 = vmatpush1.msra.mxu0 0.0
        %1777 = vmatprep.subr.mxu0 0.0
        %1778 = vmatpush1.msra.mxu0 0.0
        %1779 = vmatprep.subr.mxu0 0.0
        %1780 = vmatpush1.msra.mxu0 0.0
        %1781 = vmatprep.subr.mxu0 0.0
        %1782 = vmatpush1.msra.mxu0 0.0
        %1783 = vmatprep.subr.mxu0 0.0
        %1784 = vmatpush1.msra.mxu0 0.0
        %1785 = vmatprep.subr.mxu0 0.0
        %1786 = vmatpush1.msra.mxu0 0.0
        %1787 = vmatprep.subr.mxu0 0.0
        %1788 = vmatpush1.msra.mxu0 0.0
        %1789 = vmatprep.subr.mxu0 0.0
        %1790 = vmatpush1.msra.mxu0 0.0
        %1791 = vmatprep.mubr.f32.mxu0 0.0
        %1792 = vmatmul.mubr.f32.gmra.mrb[0].mxu0 %v1721
        %v1793 = vpop.f32.mrb[0].mxu0
        %v1794 = vadd.f32 0.0, %v1793
        %v1795 = vpop.f32.mrb[0].mxu0
        %v1796 = vadd.f32 0.0, %v1795
        %1797 = vdwg.mxu0
        %1807 = vrot.lane.b32.xlu0 %v1500, 8
        %v1808 = vpop.permute.xlu0 %1807
        %1809 = vrot.lane.b32.xlu0 %v1501, 8
        %v1810 = vpop.permute.xlu0 %1809
        %1811 = vrot.lane.b32.xlu0 %v1502, 8
        %v1812 = vpop.permute.xlu0 %1811
        %1813 = vrot.lane.b32.xlu0 %v1595, 8
        %v1814 = vpop.permute.xlu0 %1813
        %1815 = vrot.lane.b32.xlu0 %v1596, 8
        %v1816 = vpop.permute.xlu0 %1815
        %1817 = vrot.lane.b32.xlu0 %v1597, 8
        %v1818 = vpop.permute.xlu0 %1817
        %1819 = vrot.lane.b32.xlu0 %v1598, 8
        %v1820 = vpop.permute.xlu0 %1819
        %1821 = vrot.lane.b32.xlu0 %v1599, 8
        %v1822 = vpop.permute.xlu0 %1821
        %1823 = vrot.lane.b32.xlu0 %v1600, 8
        %v1824 = vpop.permute.xlu0 %1823
        %1825 = vrot.lane.b32.xlu0 %v1582, 8
        %v1826 = vpop.permute.xlu0 %1825
        %1827 = vrot.lane.b32.xlu0 %v1590, 8
        %v1828 = vpop.permute.xlu0 %1827
        %1829 = vrot.lane.b32.xlu0 %v1591, 8
        %v1830 = vpop.permute.xlu0 %1829
        %v1831 = vsel %vm1523, %v1808, %v1810
        %v1832 = vsel %vm1523, %v1810, %v1812
        %v1833 = vsel %vm1523, %v1814, %v1816
        %v1834 = vsel %vm1523, %v1816, %v1818
        %v1835 = vsel %vm1523, %v1820, %v1822
        %v1836 = vsel %vm1523, %v1822, %v1824
        %v1837 = vsel %vm1523, %v1826, %v1828
        %v1838 = vsel %vm1523, %v1828, %v1830
        %v1845 = vsel %vm1068, %v1601, 0
        %v1847 = vsel %vm457, %v1837, 0
        %v1849 = vsel %vm457, %v1838, 0
        %1851 = vmatprep.subr.mxu0 %v1832
        %1852 = vmatpush1.msra.mxu0 %v1831
        %1853 = vmatprep.subr.mxu0 %v1834
        %1854 = vmatpush1.msra.mxu0 %v1833
        %1855 = vmatprep.subr.mxu0 %v1836
        %1856 = vmatpush1.msra.mxu0 %v1835
        %1857 = vmatprep.subr.mxu0 %v1849
        %1858 = vmatpush1.msra.mxu0 %v1847
        %1859 = vmatprep.subr.mxu0 0.0
        %1860 = vmatpush1.msra.mxu0 0.0
        %1861 = vmatprep.subr.mxu0 0.0
        %1862 = vmatpush1.msra.mxu0 0.0
        %1863 = vmatprep.subr.mxu0 0.0
        %1864 = vmatpush1.msra.mxu0 0.0
        %1865 = vmatprep.subr.mxu0 0.0
        %1866 = vmatpush1.msra.mxu0 0.0
        %1867 = vmatprep.subr.mxu0 0.0
        %1868 = vmatpush1.msra.mxu0 0.0
        %1869 = vmatprep.subr.mxu0 0.0
        %1870 = vmatpush1.msra.mxu0 0.0
        %1871 = vmatprep.subr.mxu0 0.0
        %1872 = vmatpush1.msra.mxu0 0.0
        %1873 = vmatprep.subr.mxu0 0.0
        %1874 = vmatpush1.msra.mxu0 0.0
        %1875 = vmatprep.subr.mxu0 0.0
        %1876 = vmatpush1.msra.mxu0 0.0
        %1877 = vmatprep.subr.mxu0 0.0
        %1878 = vmatpush1.msra.mxu0 0.0
        %1879 = vmatprep.subr.mxu0 0.0
        %1880 = vmatpush1.msra.mxu0 0.0
        %1881 = vmatprep.subr.mxu0 0.0
        %1882 = vmatpush1.msra.mxu0 0.0
        %1883 = vmatprep.subr.mxu0 0.0
        %1884 = vmatpush1.msra.mxu0 0.0
        %1885 = vmatprep.subr.mxu0 0.0
        %1886 = vmatpush1.msra.mxu0 0.0
        %1887 = vmatprep.subr.mxu0 0.0
        %1888 = vmatpush1.msra.mxu0 0.0
        %1889 = vmatprep.subr.mxu0 0.0
        %1890 = vmatpush1.msra.mxu0 0.0
        %1891 = vmatprep.subr.mxu0 0.0
        %1892 = vmatpush1.msra.mxu0 0.0
        %1893 = vmatprep.subr.mxu0 0.0
        %1894 = vmatpush1.msra.mxu0 0.0
        %1895 = vmatprep.subr.mxu0 0.0
        %1896 = vmatpush1.msra.mxu0 0.0
        %1897 = vmatprep.subr.mxu0 0.0
        %1898 = vmatpush1.msra.mxu0 0.0
        %1899 = vmatprep.subr.mxu0 0.0
        %1900 = vmatpush1.msra.mxu0 0.0
        %1901 = vmatprep.subr.mxu0 0.0
        %1902 = vmatpush1.msra.mxu0 0.0
        %1903 = vmatprep.subr.mxu0 0.0
        %1904 = vmatpush1.msra.mxu0 0.0
        %1905 = vmatprep.subr.mxu0 0.0
        %1906 = vmatpush1.msra.mxu0 0.0
        %1907 = vmatprep.subr.mxu0 0.0
        %1908 = vmatpush1.msra.mxu0 0.0
        %1909 = vmatprep.subr.mxu0 0.0
        %1910 = vmatpush1.msra.mxu0 0.0
        %1911 = vmatprep.subr.mxu0 0.0
        %1912 = vmatpush1.msra.mxu0 0.0
        %1913 = vmatprep.subr.mxu0 0.0
        %1914 = vmatpush1.msra.mxu0 0.0
        %1915 = vmatprep.mubr.f32.mxu0 0.0
        %1916 = vmatmul.mubr.f32.gmra.mrb[0].mxu0 %v1845
        %v1917 = vpop.f32.mrb[0].mxu0
        %v1918 = vadd.f32 %v1794, %v1917
        %v1919 = vpop.f32.mrb[0].mxu0
        %v1920 = vadd.f32 %v1796, %v1919
        %1921 = vdwg.mxu0
        %v1922 = vmul.f32 %v1477, %v1493
        %v1923 = vmul.f32 %v1506, %v1496
        %v1924 = vmul.f32 %v1608, %v1495
        %v1925 = vmul.f32 %v1480, %v1493
        %v1926 = vmul.f32 %v1507, %v1496
        %v1927 = vmul.f32 %v1609, %v1495
        %v1928 = vld [vmem:[#allocation2 + $0x18] sm:$0xff]
        %v1929 = vld [vmem:[#allocation2 + $0x20] sm:$0xff]
        %v1930 = vld [vmem:[#allocation2 + $0x28] sm:$0xff]
        %v1931 = vld [vmem:[#allocation2 + $0x48] sm:$0x1]
        %v1932 = vld [vmem:[#allocation2 + $0x50] sm:$0x1]
        %v1933 = vld [vmem:[#allocation2 + $0x58] sm:$0x1]
        %v1934 = vmul.f32 %v1928, %v1520
        %v1935 = vmul.f32 %v1929, %v1524
        %v1936 = vmul.f32 %v1930, %v1522
        %v1937 = vmul.f32 %v1931, %v1520
        %v1938 = vmul.f32 %v1932, %v1524
        %v1939 = vmul.f32 %v1933, %v1522
        %v1942 = vrot.slane %v1608, 7
        %v1943 = vrot.slane %v1609, 7
        %v1944 = vsel %vm248, %v1942, %v1943
        %1945 = vrot.lane.b32.xlu0 %v1942, 120
        %v1946 = vpop.permute.xlu0 %1945
        %1947 = vrot.lane.b32.xlu0 %v1944, 120
        %v1948 = vpop.permute.xlu0 %1947
        %v1949 = vsel %vm930, %v1622, %v1946
        %v1950 = vsel %vm930, %v1624, %v1948
        %v1961 = vrot.slane %v1934, 6
        %v1962 = vrot.slane %v1935, 6
        %v1963 = vrot.slane %v1936, 6
        %v1964 = vrot.slane %v1937, 6
        %v1965 = vsel %vm356, %v1961, %v1964
        %v1966 = vrot.slane %v1938, 6
        %v1967 = vsel %vm356, %v1962, %v1966
        %v1968 = vrot.slane %v1939, 6
        %v1969 = vsel %vm356, %v1963, %v1968
        %1970 = vrot.lane.b32.xlu0 %v1961, 112
        %v1971 = vpop.permute.xlu0 %1970
        %1972 = vrot.lane.b32.xlu0 %v1962, 112
        %v1973 = vpop.permute.xlu0 %1972
        %1974 = vrot.lane.b32.xlu0 %v1963, 112
        %v1975 = vpop.permute.xlu0 %1974
        %1976 = vrot.lane.b32.xlu0 %v1965, 112
        %v1977 = vpop.permute.xlu0 %1976
        %1978 = vrot.lane.b32.xlu0 %v1967, 112
        %v1979 = vpop.permute.xlu0 %1978
        %1980 = vrot.lane.b32.xlu0 %v1969, 112
        %v1981 = vpop.permute.xlu0 %1980
        %v1982 = vsel %vm1587, %v1971, %v1973
        %v1983 = vsel %vm1587, %v1973, %v1975
        %v1984 = vsel %vm1587, %v1977, %v1979
        %v1985 = vsel %vm1587, %v1979, %v1981
        %v1989 = vsel %vm248, %v1925, %v1622
        %v1990 = vsel %vm248, %v1926, %v1949
        %v1991 = vsel %vm248, %v1927, %v1946
        %v1992 = vsel %vm356, %v1624, %v1971
        %v1993 = vsel %vm356, %v1950, %v1982
        %v1994 = vsel %vm356, %v1948, %v1983
        %1995 = vrot.lane.b32.xlu0 %v1601, 74
        %v1996 = vpop.permute.xlu0 %1995
        %2006 = vrot.lane.b32.xlu0 %v1922, 8
        %v2007 = vpop.permute.xlu0 %2006
        %2008 = vrot.lane.b32.xlu0 %v1923, 8
        %v2009 = vpop.permute.xlu0 %2008
        %2010 = vrot.lane.b32.xlu0 %v1924, 8
        %v2011 = vpop.permute.xlu0 %2010
        %2012 = vrot.lane.b32.xlu0 %v1989, 8
        %v2013 = vpop.permute.xlu0 %2012
        %2014 = vrot.lane.b32.xlu0 %v1990, 8
        %v2015 = vpop.permute.xlu0 %2014
        %2016 = vrot.lane.b32.xlu0 %v1991, 8
        %v2017 = vpop.permute.xlu0 %2016
        %2018 = vrot.lane.b32.xlu0 %v1992, 8
        %v2019 = vpop.permute.xlu0 %2018
        %2020 = vrot.lane.b32.xlu0 %v1993, 8
        %v2021 = vpop.permute.xlu0 %2020
        %2022 = vrot.lane.b32.xlu0 %v1994, 8
        %v2023 = vpop.permute.xlu0 %2022
        %2024 = vrot.lane.b32.xlu0 %v1977, 8
        %v2025 = vpop.permute.xlu0 %2024
        %2026 = vrot.lane.b32.xlu0 %v1984, 8
        %v2027 = vpop.permute.xlu0 %2026
        %2028 = vrot.lane.b32.xlu0 %v1985, 8
        %v2029 = vpop.permute.xlu0 %2028
        %v2030 = vsel %vm1523, %v2007, %v2009
        %v2031 = vsel %vm1523, %v2009, %v2011
        %v2032 = vsel %vm1523, %v2013, %v2015
        %v2033 = vsel %vm1523, %v2015, %v2017
        %v2034 = vsel %vm1523, %v2019, %v2021
        %v2035 = vsel %vm1523, %v2021, %v2023
        %v2036 = vsel %vm1523, %v2025, %v2027
        %v2037 = vsel %vm1523, %v2027, %v2029
        %v2044 = vsel %vm1068, %v1996, 0
        %v2046 = vsel %vm457, %v2036, 0
        %v2048 = vsel %vm457, %v2037, 0
        %2050 = vmatprep.subr.mxu0 %v2031
        %2051 = vmatpush1.msra.mxu0 %v2030
        %2052 = vmatprep.subr.mxu0 %v2033
        %2053 = vmatpush1.msra.mxu0 %v2032
        %2054 = vmatprep.subr.mxu0 %v2035
        %2055 = vmatpush1.msra.mxu0 %v2034
        %2056 = vmatprep.subr.mxu0 %v2048
        %2057 = vmatpush1.msra.mxu0 %v2046
        %2058 = vmatprep.subr.mxu0 0.0
        %2059 = vmatpush1.msra.mxu0 0.0
        %2060 = vmatprep.subr.mxu0 0.0
        %2061 = vmatpush1.msra.mxu0 0.0
        %2062 = vmatprep.subr.mxu0 0.0
        %2063 = vmatpush1.msra.mxu0 0.0
        %2064 = vmatprep.subr.mxu0 0.0
        %2065 = vmatpush1.msra.mxu0 0.0
        %2066 = vmatprep.subr.mxu0 0.0
        %2067 = vmatpush1.msra.mxu0 0.0
        %2068 = vmatprep.subr.mxu0 0.0
        %2069 = vmatpush1.msra.mxu0 0.0
        %2070 = vmatprep.subr.mxu0 0.0
        %2071 = vmatpush1.msra.mxu0 0.0
        %2072 = vmatprep.subr.mxu0 0.0
        %2073 = vmatpush1.msra.mxu0 0.0
        %2074 = vmatprep.subr.mxu0 0.0
        %2075 = vmatpush1.msra.mxu0 0.0
        %2076 = vmatprep.subr.mxu0 0.0
        %2077 = vmatpush1.msra.mxu0 0.0
        %2078 = vmatprep.subr.mxu0 0.0
        %2079 = vmatpush1.msra.mxu0 0.0
        %2080 = vmatprep.subr.mxu0 0.0
        %2081 = vmatpush1.msra.mxu0 0.0
        %2082 = vmatprep.subr.mxu0 0.0
        %2083 = vmatpush1.msra.mxu0 0.0
        %2084 = vmatprep.subr.mxu0 0.0
        %2085 = vmatpush1.msra.mxu0 0.0
        %2086 = vmatprep.subr.mxu0 0.0
        %2087 = vmatpush1.msra.mxu0 0.0
        %2088 = vmatprep.subr.mxu0 0.0
        %2089 = vmatpush1.msra.mxu0 0.0
        %2090 = vmatprep.subr.mxu0 0.0
        %2091 = vmatpush1.msra.mxu0 0.0
        %2092 = vmatprep.subr.mxu0 0.0
        %2093 = vmatpush1.msra.mxu0 0.0
        %2094 = vmatprep.subr.mxu0 0.0
        %2095 = vmatpush1.msra.mxu0 0.0
        %2096 = vmatprep.subr.mxu0 0.0
        %2097 = vmatpush1.msra.mxu0 0.0
        %2098 = vmatprep.subr.mxu0 0.0
        %2099 = vmatpush1.msra.mxu0 0.0
        %2100 = vmatprep.subr.mxu0 0.0
        %2101 = vmatpush1.msra.mxu0 0.0
        %2102 = vmatprep.subr.mxu0 0.0
        %2103 = vmatpush1.msra.mxu0 0.0
        %2104 = vmatprep.subr.mxu0 0.0
        %2105 = vmatpush1.msra.mxu0 0.0
        %2106 = vmatprep.subr.mxu0 0.0
        %2107 = vmatpush1.msra.mxu0 0.0
        %2108 = vmatprep.subr.mxu0 0.0
        %2109 = vmatpush1.msra.mxu0 0.0
        %2110 = vmatprep.subr.mxu0 0.0
        %2111 = vmatpush1.msra.mxu0 0.0
        %2112 = vmatprep.subr.mxu0 0.0
        %2113 = vmatpush1.msra.mxu0 0.0
        %2114 = vmatprep.mubr.f32.mxu0 0.0
        %2115 = vmatmul.mubr.f32.gmra.mrb[0].mxu0 %v2044
        %v2116 = vpop.f32.mrb[0].mxu0
        %v2117 = vadd.f32 0.0, %v2116
        %v2118 = vpop.f32.mrb[0].mxu0
        %v2119 = vadd.f32 0.0, %v2118
        %2120 = vdwg.mxu0
        %v2121 = vadd.f32 %v1918, %v2117
        %v2122 = vadd.f32 %v1920, %v2119
        %2123 = vset.pattern.permute.xlu0 13
        %2124 = vperm.xlu0 %2123, %v222
        %v2125 = vpop.permute.xlu0 %2124
        %v2127 = vadd.f32 %v2121, %v2125
        %v2128 = vadd.f32 %v2122, %v2125
        %v2129 = vmax.f32 %v2127, 0.0
        %v2130 = vmax.f32 %v2128, 0.0
        %2131 = vst [vmem:[#allocation2 + $0x10] sm:$0xff] %v2129
        %2132 = vst [vmem:[#allocation2 + $0x18] sm:$0xff] %v2130
        %v2133 = vld [vmem:[#allocation8 + $0x10] sm:$0xff]
        %v2134 = vld [vmem:[#allocation2 + $0x10] sm:$0xff]
        %v2135 = vld [vmem:[#allocation2 + $0x18] sm:$0xff]
        %v2136 = vld [vmem:[#allocation2 + $0x40] sm:$0x1]
        %v2137 = vld [vmem:[#allocation2 + $0x48] sm:$0x1]
        %2138 = vset.pattern.permute.xlu0 14
        %2139 = vperm.xlu0 %2138, %v222
        %v2140 = vpop.permute.xlu0 %2139
        %2143 = vrot.lane.b32.xlu0 %v2133, 92
        %v2144 = vpop.permute.xlu0 %2143
        %vm2145 = vcmask 72704
        %v2146 = vsel %vm2145, %v2144, 0
        %v2149 = vsel %vm248, %v2136, 0
        %v2152 = vsel %vm248, %v2137, 0
        %2154 = vmatprep.subr.mxu0 %v2135
        %2155 = vmatpush1.msra.mxu0 %v2134
        %2156 = vmatprep.subr.mxu0 %v2152
        %2157 = vmatpush1.msra.mxu0 %v2149
        %2158 = vmatprep.subr.mxu0 0.0
        %2159 = vmatpush1.msra.mxu0 0.0
        %2160 = vmatprep.subr.mxu0 0.0
        %2161 = vmatpush1.msra.mxu0 0.0
        %2162 = vmatprep.subr.mxu0 0.0
        %2163 = vmatpush1.msra.mxu0 0.0
        %2164 = vmatprep.subr.mxu0 0.0
        %2165 = vmatpush1.msra.mxu0 0.0
        %2166 = vmatprep.subr.mxu0 0.0
        %2167 = vmatpush1.msra.mxu0 0.0
        %2168 = vmatprep.subr.mxu0 0.0
        %2169 = vmatpush1.msra.mxu0 0.0
        %2170 = vmatprep.subr.mxu0 0.0
        %2171 = vmatpush1.msra.mxu0 0.0
        %2172 = vmatprep.subr.mxu0 0.0
        %2173 = vmatpush1.msra.mxu0 0.0
        %2174 = vmatprep.subr.mxu0 0.0
        %2175 = vmatpush1.msra.mxu0 0.0
        %2176 = vmatprep.subr.mxu0 0.0
        %2177 = vmatpush1.msra.mxu0 0.0
        %2178 = vmatprep.subr.mxu0 0.0
        %2179 = vmatpush1.msra.mxu0 0.0
        %2180 = vmatprep.subr.mxu0 0.0
        %2181 = vmatpush1.msra.mxu0 0.0
        %2182 = vmatprep.subr.mxu0 0.0
        %2183 = vmatpush1.msra.mxu0 0.0
        %2184 = vmatprep.subr.mxu0 0.0
        %2185 = vmatpush1.msra.mxu0 0.0
        %2186 = vmatprep.subr.mxu0 0.0
        %2187 = vmatpush1.msra.mxu0 0.0
        %2188 = vmatprep.subr.mxu0 0.0
        %2189 = vmatpush1.msra.mxu0 0.0
        %2190 = vmatprep.subr.mxu0 0.0
        %2191 = vmatpush1.msra.mxu0 0.0
        %2192 = vmatprep.subr.mxu0 0.0
        %2193 = vmatpush1.msra.mxu0 0.0
        %2194 = vmatprep.subr.mxu0 0.0
        %2195 = vmatpush1.msra.mxu0 0.0
        %2196 = vmatprep.subr.mxu0 0.0
        %2197 = vmatpush1.msra.mxu0 0.0
        %2198 = vmatprep.subr.mxu0 0.0
        %2199 = vmatpush1.msra.mxu0 0.0
        %2200 = vmatprep.subr.mxu0 0.0
        %2201 = vmatpush1.msra.mxu0 0.0
        %2202 = vmatprep.subr.mxu0 0.0
        %2203 = vmatpush1.msra.mxu0 0.0
        %2204 = vmatprep.subr.mxu0 0.0
        %2205 = vmatpush1.msra.mxu0 0.0
        %2206 = vmatprep.subr.mxu0 0.0
        %2207 = vmatpush1.msra.mxu0 0.0
        %2208 = vmatprep.subr.mxu0 0.0
        %2209 = vmatpush1.msra.mxu0 0.0
        %2210 = vmatprep.subr.mxu0 0.0
        %2211 = vmatpush1.msra.mxu0 0.0
        %2212 = vmatprep.subr.mxu0 0.0
        %2213 = vmatpush1.msra.mxu0 0.0
        %2214 = vmatprep.subr.mxu0 0.0
        %2215 = vmatpush1.msra.mxu0 0.0
        %2216 = vmatprep.subr.mxu0 0.0
        %2217 = vmatpush1.msra.mxu0 0.0
        %2218 = vmatprep.mubr.f32.mxu0 0.0
        %2219 = vmatmul.mubr.f32.gmra.mrb[0].mxu0 %v2146
        %v2220 = vpop.f32.mrb[0].mxu0
        %v2221 = vadd.f32 %v2140, %v2220
        %v2222 = vpop.f32.mrb[0].mxu0
        %v2223 = vadd.f32 %v2140, %v2222
        %2224 = vdwg.mxu0
        %2225 = vset.pattern.permute.xlu0 15
        %2226 = vperm.xlu0 %2225, %v222
        %v2227 = vpop.permute.xlu0 %2226
        %vm2229 = vcmask 326656
        %v2231 = vsel %vm2229, %v223, 0
        %2233 = vmatprep.subr.mxu0 %v265
        %2234 = vmatpush1.msra.mxu0 %v264
        %2235 = vmatprep.subr.mxu0 %v802
        %2236 = vmatpush1.msra.mxu0 %v801
        %2237 = vmatprep.subr.mxu0 %v1470
        %2238 = vmatpush1.msra.mxu0 %v1469
        %2239 = vmatprep.subr.mxu0 %v2128
        %2240 = vmatpush1.msra.mxu0 %v2127
        %2241 = vmatprep.subr.mxu0 %v2223
        %2242 = vmatpush1.msra.mxu0 %v2221
        %2243 = vmatprep.subr.mxu0 0.0
        %2244 = vmatpush1.msra.mxu0 0.0
        %2245 = vmatprep.subr.mxu0 0.0
        %2246 = vmatpush1.msra.mxu0 0.0
        %2247 = vmatprep.subr.mxu0 0.0
        %2248 = vmatpush1.msra.mxu0 0.0
        %2249 = vmatprep.subr.mxu0 0.0
        %2250 = vmatpush1.msra.mxu0 0.0
        %2251 = vmatprep.subr.mxu0 0.0
        %2252 = vmatpush1.msra.mxu0 0.0
        %2253 = vmatprep.subr.mxu0 0.0
        %2254 = vmatpush1.msra.mxu0 0.0
        %2255 = vmatprep.subr.mxu0 0.0
        %2256 = vmatpush1.msra.mxu0 0.0
        %2257 = vmatprep.subr.mxu0 0.0
        %2258 = vmatpush1.msra.mxu0 0.0
        %2259 = vmatprep.subr.mxu0 0.0
        %2260 = vmatpush1.msra.mxu0 0.0
        %2261 = vmatprep.subr.mxu0 0.0
        %2262 = vmatpush1.msra.mxu0 0.0
        %2263 = vmatprep.subr.mxu0 0.0
        %2264 = vmatpush1.msra.mxu0 0.0
        %2265 = vmatprep.subr.mxu0 0.0
        %2266 = vmatpush1.msra.mxu0 0.0
        %2267 = vmatprep.subr.mxu0 0.0
        %2268 = vmatpush1.msra.mxu0 0.0
        %2269 = vmatprep.subr.mxu0 0.0
        %2270 = vmatpush1.msra.mxu0 0.0
        %2271 = vmatprep.subr.mxu0 0.0
        %2272 = vmatpush1.msra.mxu0 0.0
        %2273 = vmatprep.subr.mxu0 0.0
        %2274 = vmatpush1.msra.mxu0 0.0
        %2275 = vmatprep.subr.mxu0 0.0
        %2276 = vmatpush1.msra.mxu0 0.0
        %2277 = vmatprep.subr.mxu0 0.0
        %2278 = vmatpush1.msra.mxu0 0.0
        %2279 = vmatprep.subr.mxu0 0.0
        %2280 = vmatpush1.msra.mxu0 0.0
        %2281 = vmatprep.subr.mxu0 0.0
        %2282 = vmatpush1.msra.mxu0 0.0
        %2283 = vmatprep.subr.mxu0 0.0
        %2284 = vmatpush1.msra.mxu0 0.0
        %2285 = vmatprep.subr.mxu0 0.0
        %2286 = vmatpush1.msra.mxu0 0.0
        %2287 = vmatprep.subr.mxu0 0.0
        %2288 = vmatpush1.msra.mxu0 0.0
        %2289 = vmatprep.subr.mxu0 0.0
        %2290 = vmatpush1.msra.mxu0 0.0
        %2291 = vmatprep.subr.mxu0 0.0
        %2292 = vmatpush1.msra.mxu0 0.0
        %2293 = vmatprep.subr.mxu0 0.0
        %2294 = vmatpush1.msra.mxu0 0.0
        %2295 = vmatprep.subr.mxu0 0.0
        %2296 = vmatpush1.msra.mxu0 0.0
        %2297 = vmatprep.mubr.f32.mxu0 0.0
        %2298 = vmatmul.mubr.f32.gmra.mrb[0].mxu0 %v2231
        %v2299 = vpop.f32.mrb[0].mxu0
        %v2300 = vadd.f32 %v2227, %v2299
        %v2301 = vpop.f32.mrb[0].mxu0
        %v2302 = vadd.f32 %v2227, %v2301
        %2303 = vdwg.mxu0
        %v2304 = vmax.f32 %v2300, 0.0
        %v2305 = vmax.f32 %v2302, 0.0
        %2306 = vst [vmem:[%s213] sm:$0xff] %v2304
        %2307 = vst [vmem:[%s213 + $0x8] sm:$0xff] %v2305
        %s2308 = sand.u32 %s97, 1
        %s2309 = scalar_lea.sflag [#allocation5], %s2308
        %s2310 = sand.u32 %s97, 1
        %s2311 = smul.addr %s2310, 16
        %s2312 = scalar_lea.vmem [#allocation9], %s2311
        // Predicated region
        $region45: #{tpu_custom_call.1} parent=31 // pred_check
          %p2313 = pneg %p107
        $region46: #{tpu_custom_call.1} parent=31 // pred_check_branch
          %2315 = sbr.rel (%p2313) target = $region48
        $region47: #{tpu_custom_call.1} parent=31 // pred_region
          %s2317 = ssub.s32 256, 256
          %2318 = vsyncadd %s2309, %s2317
          %s2319 = smul.addr %s21, 2
          %s2320 = smul.addr %s2319, 128
          %s2321 = scalar_lea.hbm %s3, %s2320
          %s2323 = sshll.u32 %s2312, 4
          %s2324 = int_to_ptr.vmem [resolvable:$true] %s2323
          %2326 = dma.vmem_to_hbm [thread:$0]  %s2324, 256, %s2321, %s2309
        $region48: #{tpu_custom_call.1} parent=31 // pred_fallthru
          _
      $region32: #{tpu_custom_call.1} parent=5 // pred_fallthru
        _
      %p2327 = scmp.le.s32.totalorder 2, %s16
      // Predicated region
      $region49: #{tpu_custom_call.1} parent=5 // pred_check
        %p2328 = pneg %p2327
      $region50: #{tpu_custom_call.1} parent=5 // pred_check_branch
        %2330 = sbr.rel (%p2328) target = $region52
      $region51: #{tpu_custom_call.1} parent=5 // pred_region
        %s2331 = ssub.s32 %s16, 2
        // Predicated region
        $region53: #{tpu_custom_call.1} parent=51 // pred_check
          %p2332 = pneg %p113
        $region54: #{tpu_custom_call.1} parent=51 // pred_check_branch
          %2334 = sbr.rel (%p2332) target = $region56
        $region55: #{tpu_custom_call.1} parent=51 // pred_region
          %s2335 = sand.u32 %s98, 1
          %s2336 = scalar_lea.sflag [#allocation5], %s2335
          %s2337 = sand.u32 %s98, 1
          %s2338 = smul.addr %s2337, 16
          %s2339 = scalar_lea.vmem [#allocation9], %s2338
          %2340 = dma.done %s2336, 256
        $region56: #{tpu_custom_call.1} parent=51 // pred_fallthru
          _
      $region52: #{tpu_custom_call.1} parent=5 // pred_fallthru
        _
    $region6: #{tpu_custom_call.1} parent=1 // loop_footer
      %s20 = sadd.s32 1, %s16
    $region7: #{tpu_custom_call.1} parent=1 // loop_footer_branch
      %15 = sbr.rel target = $region3
    $region8: #{tpu_custom_call.1} parent=1 // loop_exit
      _
    %2341 = vsyncpa [#allocation4], 1
    %s2342 = scalar_lea.sflag [#allocation4], 1
    %2343 = vsyncpa %s2342, 1
    %2344 = vsyncpa [#allocation7], 1
    %2345 = vsyncpa [#allocation5], 1
    %s2346 = scalar_lea.sflag [#allocation5], 1
    %2347 = vsyncpa %s2346, 1

</llo_original>
